<compile_context>
chip_gen: v7x
topology: tpu7x:2x2x1
jax: 0.10.0
libtpu: 0.0.40
codegen_flags: <defaults>
</compile_context>

<pallas_src>
from functools import partial

import jax
import jax.numpy as jnp
import numpy as np
from jax.experimental import pallas as pl
from jax.experimental.pallas import tpu as pltpu


# ----------------------------- helpers -------------------------------------

def _layer_norm(v, w, b, eps=1e-5):
    m = jnp.mean(v, axis=-1, keepdims=True)
    var = jnp.mean((v - m) ** 2, axis=-1, keepdims=True)
    return (v - m) * jax.lax.rsqrt(var + eps) * w + b


def mean_aggregate(x, edge_index, num_nodes):
    # segment_sum form, used only by the pure-JAX reference.
    src, dst = edge_index[0], edge_index[1]
    sums = jax.ops.segment_sum(x[src], dst, num_segments=num_nodes)
    cnt = jax.ops.segment_sum(jnp.ones((src.shape[0],), x.dtype), dst,
                              num_segments=num_nodes)
    return sums / jnp.maximum(cnt, 1.0)[:, None]


# ----------------------------- fused Pallas kernel ---------------------------

def _fused_kernel(xc_ref, eic_ref, xs_ref, eis_ref, w_ref, out_ref, *, cfg):
    f32, bf16 = jnp.float32, jnp.bfloat16
    C, C4, NC = cfg['c'], cfg['c4'], cfg['nc']

    # ---- unpack the single parameter slab with static slices ----
    wc = w_ref[cfg['r_wc']:cfg['r_wc'] + cfg['in_cnn'], 0:2 * C]     # cnn  [Wl | Wr]
    ws = w_ref[cfg['r_ws']:cfg['r_ws'] + cfg['in_swim'], 0:2 * C]    # swim [Wl | Wr]
    wh = w_ref[cfg['r_wh']:cfg['r_wh'] + C, 0:C]          # [gc_w1|gs_w1|lin1_cnn|lin1_swim]
    wt = w_ref[cfg['r_wt']:cfg['r_wt'] + 2 * C4, 0:1 + NC]  # [:,0]=gate_w2 stacked, [:,1:]=fc_w
    rows = w_ref[cfg['r_rows']:cfg['r_rows'] + 16, 0:C]     # all (1,k) bias / LN rows

    wc_b = wc.astype(bf16)
    ws_b = ws.astype(bf16)

    def mean_adj(ei, n):
        # Row-normalized mean adjacency from edge_index via one-hot compares + one NT dot.
        e = ei.shape[1]
        src = ei[0:1, :]
        dst = ei[1:2, :]
        node_ids = jax.lax.broadcasted_iota(jnp.int32, (n, e), 0)
        src_oh = (node_ids == src).astype(bf16)            # (n, E)
        dst_oh = (node_ids == dst).astype(bf16)            # (n, E)
        a = jax.lax.dot_general(dst_oh, src_oh, (((1,), (1,)), ((), ())),
                                preferred_element_type=f32)   # (n, n) edge counts (exact)
        deg = jnp.sum(a, axis=1, keepdims=True)
        return a * pl.reciprocal(jnp.maximum(deg, 1.0), approx=True)

    def sage_relu(x_ref, ei_ref, w_merged, bl):
        # SAGEConv: lin_l(mean-agg neighbors) + lin_r(x); merged weights, (A@x)@Wl == A@(x@Wl).
        x = x_ref[...].astype(bf16)
        xw = jnp.dot(x, w_merged, preferred_element_type=f32)          # (n, 2C)
        a = mean_adj(ei_ref[...], x.shape[0]).astype(bf16)
        h = (jnp.dot(a, xw[:, :C].astype(bf16), preferred_element_type=f32)
             + xw[:, C:] + bl)
        return jnp.maximum(h, 0.0)

    h_c = sage_relu(xc_ref, eic_ref, wc_b, rows[0:1, :])
    h_s = sage_relu(xs_ref, eis_ref, ws_b, rows[1:2, :])
    h_s = _layer_norm(h_s, rows[2:3, :], rows[3:4, :])      # GNN_relu_Block (swim branch)

    def att_pool2(h, w1, b1, w2, b2):
        # Two pooling rounds; gate projection G is reused (round-2 proj = G + p1@W1) and
        # pooled2 = softmax(gate2)·h + p1 since softmax weights sum to 1.
        h_b = h.astype(bf16)
        g_lin = jnp.dot(h_b, w1, preferred_element_type=f32) + b1       # (n, C4)

        def pool(gpre):
            g = jnp.maximum(gpre, 0.0)
            gate = jnp.dot(g, w2, preferred_element_type=f32) + b2      # (n, 1)
            e = jnp.exp(gate - jnp.max(gate, axis=0, keepdims=True))
            wgt = e * pl.reciprocal(jnp.sum(e, axis=0, keepdims=True), approx=True)
            return jnp.sum(wgt * h, axis=0, keepdims=True)              # (1, C) XLU reduce

        p1 = pool(g_lin)
        p2 = pool(g_lin + jnp.dot(p1.astype(bf16), w1, preferred_element_type=f32)) + p1
        return p2

    gc_w1 = wh[:, 0:C4].astype(bf16)
    gs_w1 = wh[:, C4:2 * C4].astype(bf16)
    p_c = att_pool2(h_c, gc_w1, rows[4:5, 0:C4], wt[0:C4, 0:1], rows[12:13, 0:1])
    p_s = att_pool2(h_s, gs_w1, rows[5:6, 0:C4], wt[C4:2 * C4, 0:1], rows[12:13, 1:2])

    # ---- head (tiny (1,·) rows: keep f32) ----
    def l2n(v):
        ss = jnp.sum(v * v, axis=-1, keepdims=True)
        return v * jax.lax.rsqrt(jnp.maximum(ss, 1e-24))

    yc = jnp.maximum(jnp.dot(l2n(p_c), wh[:, 2 * C4:3 * C4],
                             preferred_element_type=f32) + rows[6:7, 0:C4], 0.0)
    ys = jnp.maximum(jnp.dot(l2n(p_s), wh[:, 3 * C4:4 * C4],
                             preferred_element_type=f32) + rows[7:8, 0:C4], 0.0)
    yc = _layer_norm(yc, rows[8:9, 0:C4], rows[9:10, 0:C4])
    ys = _layer_norm(ys, rows[10:11, 0:C4], rows[11:12, 0:C4])

    # fc on cat((yc, ys)) == split matmul (avoids an in-kernel lane concat)
    out = (jnp.dot(yc, wt[0:C4, 1:1 + NC], preferred_element_type=f32)
           + jnp.dot(ys, wt[C4:2 * C4, 1:1 + NC], preferred_element_type=f32)
           + rows[13:14, 0:NC])
    out_ref[...] = jax.nn.sigmoid(out)


def make_fusion_forward(cfg):
    kern = partial(_fused_kernel, cfg=cfg)

    def forward(slab, x_cnn, x_swim, ei_cnn, ei_swim):
        return pl.pallas_call(
            kern,
            out_shape=jax.ShapeDtypeStruct((1, cfg['nc']), jnp.float32),
            in_specs=[pl.BlockSpec(memory_space=pltpu.MemorySpace.VMEM)] * 5,
            out_specs=pl.BlockSpec(memory_space=pltpu.MemorySpace.VMEM),
        )(x_cnn, ei_cnn, x_swim, ei_swim, slab)

    return forward


# ----------------------------- parameter packing ------------------------------

def pack_params(p):
    """Pack every parameter into a single (rows, 128)-lane f32 slab (built once at init)."""
    in_cnn = p['cnn_wl'].shape[0]
    in_swim = p['swim_wl'].shape[0]
    c = p['cnn_wl'].shape[1]
    c4 = c // 4
    nc = p['fc_b'].shape[1]
    lanes = max(2 * c, 128)

    def blk(m):  # pad rows to multiple of 8 and lanes to slab width
        r, k = m.shape
        return jnp.pad(m, ((0, (-r) % 8), (0, lanes - k)))

    def rowpad(v):  # pad a (1,k) row to (1,c)
        return jnp.pad(v, ((0, 0), (0, c - v.shape[1])))

    wc = jnp.concatenate([p['cnn_wl'], p['cnn_wr']], axis=1)                    # (in_cnn, 2C)
    ws = jnp.concatenate([p['swim_wl'], p['swim_wr']], axis=1)                  # (in_swim, 2C)
    wh = jnp.concatenate([p['gc_w1'], p['gs_w1'],
                          p['lin1_cnn_w'], p['lin1_swim_w']], axis=1)           # (C, C)
    wt = jnp.concatenate([jnp.concatenate([p['gc_w2'], p['gs_w2']], axis=0),
                          jnp.concatenate([p['fc_w_cnn'], p['fc_w_swim']], axis=0)],
                         axis=1)                                                # (2*C4, 1+NC)
    rows = jnp.concatenate([
        p['cnn_bl'], p['swim_bl'], p['ln_swim_w'], p['ln_swim_b'],
        rowpad(p['gc_b1']), rowpad(p['gs_b1']),
        rowpad(p['lin1_cnn_b']), rowpad(p['lin1_swim_b']),
        rowpad(p['norm_cnn_w']), rowpad(p['norm_cnn_b']),
        rowpad(p['norm_swim_w']), rowpad(p['norm_swim_b']),
        rowpad(jnp.concatenate([p['gc_b2'], p['gs_b2']], axis=1)),
        rowpad(p['fc_b']),
    ], axis=0)                                                                  # (14, C)

    blocks = [blk(wc), blk(ws), blk(wh), blk(wt), blk(rows)]
    offs, o = [], 0
    for b in blocks:
        offs.append(o)
        o += b.shape[0]
    slab = jnp.concatenate(blocks, axis=0).astype(jnp.float32)
    cfg = dict(c=c, c4=c4, nc=nc, in_cnn=in_cnn, in_swim=in_swim,
               r_wc=offs[0], r_ws=offs[1], r_wh=offs[2], r_wt=offs[3], r_rows=offs[4])
    return slab, cfg


def init_params(key, in_cnn, in_swim, out_classes, num_classes):
    c, c4 = out_classes, out_classes // 4
    ks = iter(jax.random.split(key, 32))

    def lin(fan_in, fan_out, bias=True):
        bound = 1.0 / np.sqrt(fan_in)
        w = jax.random.uniform(next(ks), (fan_in, fan_out), jnp.float32, -bound, bound)
        b = (jax.random.uniform(next(ks), (1, fan_out), jnp.float32, -bound, bound)
             if bias else None)
        return w, b

    p = {}
    # SAGEConv: lin_l (bias) on mean-aggregated neighbors, lin_r (no bias) on x.
    p['cnn_wl'], p['cnn_bl'] = lin(in_cnn, c)
    p['cnn_wr'], _ = lin(in_cnn, c, bias=False)
    p['swim_wl'], p['swim_bl'] = lin(in_swim, c)
    p['swim_wr'], _ = lin(in_swim, c, bias=False)
    # GNN_relu_Block LayerNorm (swim branch; cnn branch uses plain torch.relu)
    p['ln_swim_w'] = jnp.ones((1, c), jnp.float32)
    p['ln_swim_b'] = jnp.zeros((1, c), jnp.float32)
    # attention gate nets: Linear(C, C//4) -> ReLU -> Linear(C//4, 1)
    p['gc_w1'], p['gc_b1'] = lin(c, c4)
    p['gc_w2'], p['gc_b2'] = lin(c4, 1)
    p['gs_w1'], p['gs_b1'] = lin(c, c4)
    p['gs_w2'], p['gs_b2'] = lin(c4, 1)
    # head
    p['lin1_cnn_w'], p['lin1_cnn_b'] = lin(c, c4)
    p['lin1_swim_w'], p['lin1_swim_b'] = lin(c, c4)
    p['norm_cnn_w'] = jnp.ones((1, c4), jnp.float32)
    p['norm_cnn_b'] = jnp.zeros((1, c4), jnp.float32)
    p['norm_swim_w'] = jnp.ones((1, c4), jnp.float32)
    p['norm_swim_b'] = jnp.zeros((1, c4), jnp.float32)
    fc_w, p['fc_b'] = lin(2 * c4, num_classes)
    p['fc_w_cnn'] = fc_w[:c4]
    p['fc_w_swim'] = fc_w[c4:]
    return p


# ----------------------------- pure-JAX reference ----------------------------

def reference_forward(p, x_cnn, x_swim, ei_cnn, ei_swim):
    agg_c = mean_aggregate(x_cnn, ei_cnn, x_cnn.shape[0])
    agg_s = mean_aggregate(x_swim, ei_swim, x_swim.shape[0])
    h_c = jnp.maximum(agg_c @ p['cnn_wl'] + p['cnn_bl'] + x_cnn @ p['cnn_wr'], 0.0)
    h_s = jnp.maximum(agg_s @ p['swim_wl'] + p['swim_bl'] + x_swim @ p['swim_wr'], 0.0)
    h_s = _layer_norm(h_s, p['ln_swim_w'], p['ln_swim_b'])

    def pool(h, w1, b1, w2, b2):
        g = jnp.maximum(h @ w1 + b1, 0.0) @ w2 + b2
        g = jax.nn.softmax(g, axis=0)
        return jnp.sum(g * h, axis=0, keepdims=True)

    p_c1 = pool(h_c, p['gc_w1'], p['gc_b1'], p['gc_w2'], p['gc_b2'])
    p_s1 = pool(h_s, p['gs_w1'], p['gs_b1'], p['gs_w2'], p['gs_b2'])
    p_c2 = pool(h_c + p_c1, p['gc_w1'], p['gc_b1'], p['gc_w2'], p['gc_b2'])
    p_s2 = pool(h_s + p_s1, p['gs_w1'], p['gs_b1'], p['gs_w2'], p['gs_b2'])
    x = jnp.concatenate([p_c2, p_s2], axis=0)
    x = x / jnp.maximum(jnp.sqrt(jnp.sum(x * x, axis=1, keepdims=True)), 1e-12)
    yc = _layer_norm(jnp.maximum(x[0:1] @ p['lin1_cnn_w'] + p['lin1_cnn_b'], 0.0),
                     p['norm_cnn_w'], p['norm_cnn_b'])
    ys = _layer_norm(jnp.maximum(x[1:2] @ p['lin1_swim_w'] + p['lin1_swim_b'], 0.0),
                     p['norm_swim_w'], p['norm_swim_b'])
    out = yc @ p['fc_w_cnn'] + ys @ p['fc_w_swim'] + p['fc_b']
    return jax.nn.sigmoid(out)


# ----------------------------- main ------------------------------------------

if __name__ == "__main__":
    # Small, module-consistent shapes
    IN_CNN, IN_SWIM = 32, 48
    OUT_CLASSES, NUM_CLASSES = 64, 3
    N_CNN, N_SWIM = 16, 12
    E_CNN, E_SWIM = 32, 24

    root = jax.random.PRNGKey(0)
    k_par, k_xc, k_xs, k_ec, k_es = jax.random.split(root, 5)

    params = init_params(k_par, IN_CNN, IN_SWIM, OUT_CLASSES, NUM_CLASSES)
    slab, cfg = pack_params(params)          # one-time packing at init (not on the hot path)

    x_cnn = jax.random.normal(k_xc, (N_CNN, IN_CNN), jnp.float32)
    x_swim = jax.random.normal(k_xs, (N_SWIM, IN_SWIM), jnp.float32)
    ei_cnn = jax.random.randint(k_ec, (2, E_CNN), 0, N_CNN, dtype=jnp.int32)
    ei_swim = jax.random.randint(k_es, (2, E_SWIM), 0, N_SWIM, dtype=jnp.int32)

    fwd = jax.jit(make_fusion_forward(cfg))
    out = jax.block_until_ready(fwd(slab, x_cnn, x_swim, ei_cnn, ei_swim))

    ref = jax.block_until_ready(
        reference_forward(params, x_cnn, x_swim, ei_cnn, ei_swim))

    assert out.shape == (1, NUM_CLASSES)
    assert np.all(np.isfinite(np.asarray(out)))
    np.testing.assert_allclose(np.asarray(out), np.asarray(ref), rtol=1e-2, atol=1e-2)
    print("KERNEL_OK")
</pallas_src>

<mosaic_0001>
module attributes {stable_mosaic.version = 11 : i64} {
  func.func @_fused_kernel(%arg0: memref<16x32xf32, #tpu.memory_space<vmem>>, %arg1: memref<2x32xi32, #tpu.memory_space<vmem>>, %arg2: memref<12x48xf32, #tpu.memory_space<vmem>>, %arg3: memref<2x24xi32, #tpu.memory_space<vmem>>, %arg4: memref<192x128xf32, #tpu.memory_space<vmem>>, %arg5: memref<1x3xf32, #tpu.memory_space<vmem>>) attributes {dimension_semantics = [], scalar_prefetch = 0 : i64, scratch_operands = 0 : i64, tpu.core_type = #tpu.core_type<tc>} {
    %c0 = arith.constant 0 : index
    %c0_0 = arith.constant 0 : index
    %0 = vector.load %arg4[%c0, %c0_0] : memref<192x128xf32, #tpu.memory_space<vmem>>, vector<32x128xf32>
    %c32 = arith.constant 32 : index
    %c0_1 = arith.constant 0 : index
    %1 = vector.load %arg4[%c32, %c0_1] : memref<192x128xf32, #tpu.memory_space<vmem>>, vector<48x128xf32>
    %c80 = arith.constant 80 : index
    %c0_2 = arith.constant 0 : index
    %2 = vector.load %arg4[%c80, %c0_2] : memref<192x128xf32, #tpu.memory_space<vmem>>, vector<64x64xf32>
    %c144 = arith.constant 144 : index
    %c0_3 = arith.constant 0 : index
    %3 = vector.load %arg4[%c144, %c0_3] : memref<192x128xf32, #tpu.memory_space<vmem>>, vector<32x4xf32>
    %c176 = arith.constant 176 : index
    %c0_4 = arith.constant 0 : index
    %4 = vector.load %arg4[%c176, %c0_4] : memref<192x128xf32, #tpu.memory_space<vmem>>, vector<16x64xf32>
    %5 = arith.truncf %0 : vector<32x128xf32> to vector<32x128xbf16>
    %6 = arith.truncf %1 : vector<48x128xf32> to vector<48x128xbf16>
    %7 = vector.extract_strided_slice %4 {offsets = [0, 0], sizes = [1, 64], strides = [1, 1]} : vector<16x64xf32> to vector<1x64xf32>
    %c0_5 = arith.constant 0 : index
    %c0_6 = arith.constant 0 : index
    %8 = vector.load %arg0[%c0_5, %c0_6] : memref<16x32xf32, #tpu.memory_space<vmem>>, vector<16x32xf32>
    %9 = arith.truncf %8 : vector<16x32xf32> to vector<16x32xbf16>
    %cst = arith.constant dense<0.000000e+00> : vector<16x128xf32>
    %10 = tpu.matmul %9, %5, %cst {dimension_numbers = #tpu.dot_dimension_numbers<[1], [0], [0], [1], [0, 0, 1, 1], [], []>} : vector<16x32xbf16>, vector<32x128xbf16>, vector<16x128xf32> -> vector<16x128xf32>
    %c0_7 = arith.constant 0 : index
    %c0_8 = arith.constant 0 : index
    %11 = vector.load %arg1[%c0_7, %c0_8] : memref<2x32xi32, #tpu.memory_space<vmem>>, vector<2x32xi32>
    %12 = vector.extract_strided_slice %11 {offsets = [0, 0], sizes = [1, 32], strides = [1, 1]} : vector<2x32xi32> to vector<1x32xi32>
    %13 = vector.extract_strided_slice %11 {offsets = [1, 0], sizes = [1, 32], strides = [1, 1]} : vector<2x32xi32> to vector<1x32xi32>
    %14 = tpu.iota {dimensions = array<i32: 0>} : vector<16x32xi32>
    %15 = vector.broadcast %12 : vector<1x32xi32> to vector<16x32xi32>
    %16 = arith.cmpi eq, %14, %15 : vector<16x32xi32>
    %17 = arith.extui %16 : vector<16x32xi1> to vector<16x32xi32>
    %18 = arith.sitofp %17 : vector<16x32xi32> to vector<16x32xf32>
    %19 = arith.truncf %18 : vector<16x32xf32> to vector<16x32xbf16>
    %20 = vector.broadcast %13 : vector<1x32xi32> to vector<16x32xi32>
    %21 = arith.cmpi eq, %14, %20 : vector<16x32xi32>
    %22 = arith.extui %21 : vector<16x32xi1> to vector<16x32xi32>
    %23 = arith.sitofp %22 : vector<16x32xi32> to vector<16x32xf32>
    %24 = arith.truncf %23 : vector<16x32xf32> to vector<16x32xbf16>
    %cst_9 = arith.constant dense<0.000000e+00> : vector<16x16xf32>
    %25 = tpu.matmul %24, %19, %cst_9 {dimension_numbers = #tpu.dot_dimension_numbers<[1], [1], [0], [0], [0, 0, 1, 0], [], []>} : vector<16x32xbf16>, vector<16x32xbf16>, vector<16x16xf32> -> vector<16x16xf32>
    %cst_10 = arith.constant dense<0.000000e+00> : vector<16xf32>
    %26 = vector.multi_reduction <add>, %25, %cst_10 [1] : vector<16x16xf32> to vector<16xf32>
    %27 = vector.shape_cast %26 : vector<16xf32> to vector<16x1xf32>
    %cst_11 = arith.constant 1.000000e+00 : f32
    %28 = vector.broadcast %cst_11 : f32 to vector<16x1xf32>
    %29 = arith.maximumf %27, %28 : vector<16x1xf32>
    %30 = tpu.reciprocal %29 {approx = true} : vector<16x1xf32> -> vector<16x1xf32>
    %31 = vector.broadcast %30 : vector<16x1xf32> to vector<16x16xf32>
    %32 = arith.mulf %25, %31 : vector<16x16xf32>
    %33 = arith.truncf %32 : vector<16x16xf32> to vector<16x16xbf16>
    %34 = vector.extract_strided_slice %10 {offsets = [0, 0], sizes = [16, 64], strides = [1, 1]} : vector<16x128xf32> to vector<16x64xf32>
    %35 = arith.truncf %34 : vector<16x64xf32> to vector<16x64xbf16>
    %cst_12 = arith.constant dense<0.000000e+00> : vector<16x64xf32>
    %36 = tpu.matmul %33, %35, %cst_12 {dimension_numbers = #tpu.dot_dimension_numbers<[1], [0], [0], [1], [0, 0, 1, 1], [], []>} : vector<16x16xbf16>, vector<16x64xbf16>, vector<16x64xf32> -> vector<16x64xf32>
    %37 = vector.extract_strided_slice %10 {offsets = [0, 64], sizes = [16, 64], strides = [1, 1]} : vector<16x128xf32> to vector<16x64xf32>
    %38 = arith.addf %36, %37 : vector<16x64xf32>
    %39 = vector.broadcast %7 : vector<1x64xf32> to vector<16x64xf32>
    %40 = arith.addf %38, %39 : vector<16x64xf32>
    %cst_13 = arith.constant 0.000000e+00 : f32
    %41 = vector.broadcast %cst_13 : f32 to vector<16x64xf32>
    %42 = arith.maximumf %40, %41 : vector<16x64xf32>
    %43 = vector.extract_strided_slice %4 {offsets = [1, 0], sizes = [1, 64], strides = [1, 1]} : vector<16x64xf32> to vector<1x64xf32>
    %c0_14 = arith.constant 0 : index
    %c0_15 = arith.constant 0 : index
    %44 = vector.load %arg2[%c0_14, %c0_15] : memref<12x48xf32, #tpu.memory_space<vmem>>, vector<12x48xf32>
    %45 = arith.truncf %44 : vector<12x48xf32> to vector<12x48xbf16>
    %cst_16 = arith.constant dense<0.000000e+00> : vector<12x128xf32>
    %46 = tpu.matmul %45, %6, %cst_16 {dimension_numbers = #tpu.dot_dimension_numbers<[1], [0], [0], [1], [0, 0, 1, 1], [], []>} : vector<12x48xbf16>, vector<48x128xbf16>, vector<12x128xf32> -> vector<12x128xf32>
    %c0_17 = arith.constant 0 : index
    %c0_18 = arith.constant 0 : index
    %47 = vector.load %arg3[%c0_17, %c0_18] : memref<2x24xi32, #tpu.memory_space<vmem>>, vector<2x24xi32>
    %48 = vector.extract_strided_slice %47 {offsets = [0, 0], sizes = [1, 24], strides = [1, 1]} : vector<2x24xi32> to vector<1x24xi32>
    %49 = vector.extract_strided_slice %47 {offsets = [1, 0], sizes = [1, 24], strides = [1, 1]} : vector<2x24xi32> to vector<1x24xi32>
    %50 = tpu.iota {dimensions = array<i32: 0>} : vector<12x24xi32>
    %51 = vector.broadcast %48 : vector<1x24xi32> to vector<12x24xi32>
    %52 = arith.cmpi eq, %50, %51 : vector<12x24xi32>
    %53 = arith.extui %52 : vector<12x24xi1> to vector<12x24xi32>
    %54 = arith.sitofp %53 : vector<12x24xi32> to vector<12x24xf32>
    %55 = arith.truncf %54 : vector<12x24xf32> to vector<12x24xbf16>
    %56 = vector.broadcast %49 : vector<1x24xi32> to vector<12x24xi32>
    %57 = arith.cmpi eq, %50, %56 : vector<12x24xi32>
    %58 = arith.extui %57 : vector<12x24xi1> to vector<12x24xi32>
    %59 = arith.sitofp %58 : vector<12x24xi32> to vector<12x24xf32>
    %60 = arith.truncf %59 : vector<12x24xf32> to vector<12x24xbf16>
    %cst_19 = arith.constant dense<0.000000e+00> : vector<12x12xf32>
    %61 = tpu.matmul %60, %55, %cst_19 {dimension_numbers = #tpu.dot_dimension_numbers<[1], [1], [0], [0], [0, 0, 1, 0], [], []>} : vector<12x24xbf16>, vector<12x24xbf16>, vector<12x12xf32> -> vector<12x12xf32>
    %cst_20 = arith.constant dense<0.000000e+00> : vector<12xf32>
    %62 = vector.multi_reduction <add>, %61, %cst_20 [1] : vector<12x12xf32> to vector<12xf32>
    %63 = vector.shape_cast %62 : vector<12xf32> to vector<12x1xf32>
    %cst_21 = arith.constant 1.000000e+00 : f32
    %64 = vector.broadcast %cst_21 : f32 to vector<12x1xf32>
    %65 = arith.maximumf %63, %64 : vector<12x1xf32>
    %66 = tpu.reciprocal %65 {approx = true} : vector<12x1xf32> -> vector<12x1xf32>
    %67 = vector.broadcast %66 : vector<12x1xf32> to vector<12x12xf32>
    %68 = arith.mulf %61, %67 : vector<12x12xf32>
    %69 = arith.truncf %68 : vector<12x12xf32> to vector<12x12xbf16>
    %70 = vector.extract_strided_slice %46 {offsets = [0, 0], sizes = [12, 64], strides = [1, 1]} : vector<12x128xf32> to vector<12x64xf32>
    %71 = arith.truncf %70 : vector<12x64xf32> to vector<12x64xbf16>
    %cst_22 = arith.constant dense<0.000000e+00> : vector<12x64xf32>
    %72 = tpu.matmul %69, %71, %cst_22 {dimension_numbers = #tpu.dot_dimension_numbers<[1], [0], [0], [1], [0, 0, 1, 1], [], []>} : vector<12x12xbf16>, vector<12x64xbf16>, vector<12x64xf32> -> vector<12x64xf32>
    %73 = vector.extract_strided_slice %46 {offsets = [0, 64], sizes = [12, 64], strides = [1, 1]} : vector<12x128xf32> to vector<12x64xf32>
    %74 = arith.addf %72, %73 : vector<12x64xf32>
    %75 = vector.broadcast %43 : vector<1x64xf32> to vector<12x64xf32>
    %76 = arith.addf %74, %75 : vector<12x64xf32>
    %cst_23 = arith.constant 0.000000e+00 : f32
    %77 = vector.broadcast %cst_23 : f32 to vector<12x64xf32>
    %78 = arith.maximumf %76, %77 : vector<12x64xf32>
    %79 = vector.extract_strided_slice %4 {offsets = [2, 0], sizes = [1, 64], strides = [1, 1]} : vector<16x64xf32> to vector<1x64xf32>
    %80 = vector.extract_strided_slice %4 {offsets = [3, 0], sizes = [1, 64], strides = [1, 1]} : vector<16x64xf32> to vector<1x64xf32>
    %cst_24 = arith.constant dense<0.000000e+00> : vector<12xf32>
    %81 = vector.multi_reduction <add>, %78, %cst_24 [1] : vector<12x64xf32> to vector<12xf32>
    %82 = vector.shape_cast %81 : vector<12xf32> to vector<12x1xf32>
    %cst_25 = arith.constant 6.400000e+01 : f32
    %83 = vector.broadcast %cst_25 : f32 to vector<12x1xf32>
    %84 = arith.divf %82, %83 : vector<12x1xf32>
    %85 = vector.broadcast %84 : vector<12x1xf32> to vector<12x64xf32>
    %86 = arith.subf %78, %85 : vector<12x64xf32>
    %87 = arith.mulf %86, %86 : vector<12x64xf32>
    %cst_26 = arith.constant dense<0.000000e+00> : vector<12xf32>
    %88 = vector.multi_reduction <add>, %87, %cst_26 [1] : vector<12x64xf32> to vector<12xf32>
    %89 = vector.shape_cast %88 : vector<12xf32> to vector<12x1xf32>
    %cst_27 = arith.constant 6.400000e+01 : f32
    %90 = vector.broadcast %cst_27 : f32 to vector<12x1xf32>
    %91 = arith.divf %89, %90 : vector<12x1xf32>
    %92 = vector.broadcast %84 : vector<12x1xf32> to vector<12x64xf32>
    %93 = arith.subf %78, %92 : vector<12x64xf32>
    %cst_28 = arith.constant 9.99999974E-6 : f32
    %94 = vector.broadcast %cst_28 : f32 to vector<12x1xf32>
    %95 = arith.addf %91, %94 : vector<12x1xf32>
    %96 = math.rsqrt %95 : vector<12x1xf32>
    %97 = vector.broadcast %96 : vector<12x1xf32> to vector<12x64xf32>
    %98 = arith.mulf %93, %97 : vector<12x64xf32>
    %99 = vector.broadcast %79 : vector<1x64xf32> to vector<12x64xf32>
    %100 = arith.mulf %98, %99 : vector<12x64xf32>
    %101 = vector.broadcast %80 : vector<1x64xf32> to vector<12x64xf32>
    %102 = arith.addf %100, %101 : vector<12x64xf32>
    %103 = vector.extract_strided_slice %2 {offsets = [0, 0], sizes = [64, 16], strides = [1, 1]} : vector<64x64xf32> to vector<64x16xf32>
    %104 = arith.truncf %103 : vector<64x16xf32> to vector<64x16xbf16>
    %105 = vector.extract_strided_slice %2 {offsets = [0, 16], sizes = [64, 16], strides = [1, 1]} : vector<64x64xf32> to vector<64x16xf32>
    %106 = arith.truncf %105 : vector<64x16xf32> to vector<64x16xbf16>
    %107 = vector.extract_strided_slice %4 {offsets = [4, 0], sizes = [1, 16], strides = [1, 1]} : vector<16x64xf32> to vector<1x16xf32>
    %108 = vector.extract_strided_slice %3 {offsets = [0, 0], sizes = [16, 1], strides = [1, 1]} : vector<32x4xf32> to vector<16x1xf32>
    %109 = vector.extract_strided_slice %4 {offsets = [12, 0], sizes = [1, 1], strides = [1, 1]} : vector<16x64xf32> to vector<1x1xf32>
    %110 = arith.truncf %42 : vector<16x64xf32> to vector<16x64xbf16>
    %cst_29 = arith.constant dense<0.000000e+00> : vector<16x16xf32>
    %111 = tpu.matmul %110, %104, %cst_29 {dimension_numbers = #tpu.dot_dimension_numbers<[1], [0], [0], [1], [0, 0, 1, 1], [], []>} : vector<16x64xbf16>, vector<64x16xbf16>, vector<16x16xf32> -> vector<16x16xf32>
    %112 = vector.broadcast %107 : vector<1x16xf32> to vector<16x16xf32>
    %113 = arith.addf %111, %112 : vector<16x16xf32>
    %cst_30 = arith.constant 0.000000e+00 : f32
    %114 = vector.broadcast %cst_30 : f32 to vector<16x16xf32>
    %115 = arith.maximumf %113, %114 : vector<16x16xf32>
    %cst_31 = arith.constant dense<0.000000e+00> : vector<16x1xf32>
    %116 = tpu.matmul %115, %108, %cst_31 {dimension_numbers = #tpu.dot_dimension_numbers<[1], [0], [0], [1], [0, 0, 1, 1], [], []>} : vector<16x16xf32>, vector<16x1xf32>, vector<16x1xf32> -> vector<16x1xf32>
    %117 = vector.broadcast %109 : vector<1x1xf32> to vector<16x1xf32>
    %118 = arith.addf %116, %117 : vector<16x1xf32>
    %cst_32 = arith.constant dense<0xFF800000> : vector<1xf32>
    %119 = vector.multi_reduction <maximumf>, %118, %cst_32 [0] : vector<16x1xf32> to vector<1xf32>
    %120 = vector.shape_cast %119 : vector<1xf32> to vector<1x1xf32>
    %121 = vector.broadcast %120 : vector<1x1xf32> to vector<16x1xf32>
    %122 = arith.subf %118, %121 : vector<16x1xf32>
    %123 = math.exp %122 : vector<16x1xf32>
    %cst_33 = arith.constant dense<0.000000e+00> : vector<1xf32>
    %124 = vector.multi_reduction <add>, %123, %cst_33 [0] : vector<16x1xf32> to vector<1xf32>
    %125 = vector.shape_cast %124 : vector<1xf32> to vector<1x1xf32>
    %126 = tpu.reciprocal %125 {approx = true} : vector<1x1xf32> -> vector<1x1xf32>
    %127 = vector.broadcast %126 : vector<1x1xf32> to vector<16x1xf32>
    %128 = arith.mulf %123, %127 : vector<16x1xf32>
    %129 = vector.broadcast %128 : vector<16x1xf32> to vector<16x64xf32>
    %130 = arith.mulf %129, %42 : vector<16x64xf32>
    %cst_34 = arith.constant dense<0.000000e+00> : vector<64xf32>
    %131 = vector.multi_reduction <add>, %130, %cst_34 [0] : vector<16x64xf32> to vector<64xf32>
    %132 = vector.shape_cast %131 : vector<64xf32> to vector<1x64xf32>
    %133 = arith.truncf %132 : vector<1x64xf32> to vector<1x64xbf16>
    %cst_35 = arith.constant dense<0.000000e+00> : vector<1x16xf32>
    %134 = tpu.matmul %133, %104, %cst_35 {dimension_numbers = #tpu.dot_dimension_numbers<[1], [0], [0], [1], [0, 0, 1, 1], [], []>} : vector<1x64xbf16>, vector<64x16xbf16>, vector<1x16xf32> -> vector<1x16xf32>
    %135 = vector.broadcast %134 : vector<1x16xf32> to vector<16x16xf32>
    %136 = arith.addf %113, %135 : vector<16x16xf32>
    %cst_36 = arith.constant 0.000000e+00 : f32
    %137 = vector.broadcast %cst_36 : f32 to vector<16x16xf32>
    %138 = arith.maximumf %136, %137 : vector<16x16xf32>
    %cst_37 = arith.constant dense<0.000000e+00> : vector<16x1xf32>
    %139 = tpu.matmul %138, %108, %cst_37 {dimension_numbers = #tpu.dot_dimension_numbers<[1], [0], [0], [1], [0, 0, 1, 1], [], []>} : vector<16x16xf32>, vector<16x1xf32>, vector<16x1xf32> -> vector<16x1xf32>
    %140 = vector.broadcast %109 : vector<1x1xf32> to vector<16x1xf32>
    %141 = arith.addf %139, %140 : vector<16x1xf32>
    %cst_38 = arith.constant dense<0xFF800000> : vector<1xf32>
    %142 = vector.multi_reduction <maximumf>, %141, %cst_38 [0] : vector<16x1xf32> to vector<1xf32>
    %143 = vector.shape_cast %142 : vector<1xf32> to vector<1x1xf32>
    %144 = vector.broadcast %143 : vector<1x1xf32> to vector<16x1xf32>
    %145 = arith.subf %141, %144 : vector<16x1xf32>
    %146 = math.exp %145 : vector<16x1xf32>
    %cst_39 = arith.constant dense<0.000000e+00> : vector<1xf32>
    %147 = vector.multi_reduction <add>, %146, %cst_39 [0] : vector<16x1xf32> to vector<1xf32>
    %148 = vector.shape_cast %147 : vector<1xf32> to vector<1x1xf32>
    %149 = tpu.reciprocal %148 {approx = true} : vector<1x1xf32> -> vector<1x1xf32>
    %150 = vector.broadcast %149 : vector<1x1xf32> to vector<16x1xf32>
    %151 = arith.mulf %146, %150 : vector<16x1xf32>
    %152 = vector.broadcast %151 : vector<16x1xf32> to vector<16x64xf32>
    %153 = arith.mulf %152, %42 : vector<16x64xf32>
    %cst_40 = arith.constant dense<0.000000e+00> : vector<64xf32>
    %154 = vector.multi_reduction <add>, %153, %cst_40 [0] : vector<16x64xf32> to vector<64xf32>
    %155 = vector.shape_cast %154 : vector<64xf32> to vector<1x64xf32>
    %156 = arith.addf %155, %132 : vector<1x64xf32>
    %157 = vector.extract_strided_slice %4 {offsets = [5, 0], sizes = [1, 16], strides = [1, 1]} : vector<16x64xf32> to vector<1x16xf32>
    %158 = vector.extract_strided_slice %3 {offsets = [16, 0], sizes = [16, 1], strides = [1, 1]} : vector<32x4xf32> to vector<16x1xf32>
    %159 = vector.extract_strided_slice %4 {offsets = [12, 1], sizes = [1, 1], strides = [1, 1]} : vector<16x64xf32> to vector<1x1xf32>
    %160 = arith.truncf %102 : vector<12x64xf32> to vector<12x64xbf16>
    %cst_41 = arith.constant dense<0.000000e+00> : vector<12x16xf32>
    %161 = tpu.matmul %160, %106, %cst_41 {dimension_numbers = #tpu.dot_dimension_numbers<[1], [0], [0], [1], [0, 0, 1, 1], [], []>} : vector<12x64xbf16>, vector<64x16xbf16>, vector<12x16xf32> -> vector<12x16xf32>
    %162 = vector.broadcast %157 : vector<1x16xf32> to vector<12x16xf32>
    %163 = arith.addf %161, %162 : vector<12x16xf32>
    %cst_42 = arith.constant 0.000000e+00 : f32
    %164 = vector.broadcast %cst_42 : f32 to vector<12x16xf32>
    %165 = arith.maximumf %163, %164 : vector<12x16xf32>
    %cst_43 = arith.constant dense<0.000000e+00> : vector<12x1xf32>
    %166 = tpu.matmul %165, %158, %cst_43 {dimension_numbers = #tpu.dot_dimension_numbers<[1], [0], [0], [1], [0, 0, 1, 1], [], []>} : vector<12x16xf32>, vector<16x1xf32>, vector<12x1xf32> -> vector<12x1xf32>
    %167 = vector.broadcast %159 : vector<1x1xf32> to vector<12x1xf32>
    %168 = arith.addf %166, %167 : vector<12x1xf32>
    %cst_44 = arith.constant dense<0xFF800000> : vector<1xf32>
    %169 = vector.multi_reduction <maximumf>, %168, %cst_44 [0] : vector<12x1xf32> to vector<1xf32>
    %170 = vector.shape_cast %169 : vector<1xf32> to vector<1x1xf32>
    %171 = vector.broadcast %170 : vector<1x1xf32> to vector<12x1xf32>
    %172 = arith.subf %168, %171 : vector<12x1xf32>
    %173 = math.exp %172 : vector<12x1xf32>
    %cst_45 = arith.constant dense<0.000000e+00> : vector<1xf32>
    %174 = vector.multi_reduction <add>, %173, %cst_45 [0] : vector<12x1xf32> to vector<1xf32>
    %175 = vector.shape_cast %174 : vector<1xf32> to vector<1x1xf32>
    %176 = tpu.reciprocal %175 {approx = true} : vector<1x1xf32> -> vector<1x1xf32>
    %177 = vector.broadcast %176 : vector<1x1xf32> to vector<12x1xf32>
    %178 = arith.mulf %173, %177 : vector<12x1xf32>
    %179 = vector.broadcast %178 : vector<12x1xf32> to vector<12x64xf32>
    %180 = arith.mulf %179, %102 : vector<12x64xf32>
    %cst_46 = arith.constant dense<0.000000e+00> : vector<64xf32>
    %181 = vector.multi_reduction <add>, %180, %cst_46 [0] : vector<12x64xf32> to vector<64xf32>
    %182 = vector.shape_cast %181 : vector<64xf32> to vector<1x64xf32>
    %183 = arith.truncf %182 : vector<1x64xf32> to vector<1x64xbf16>
    %cst_47 = arith.constant dense<0.000000e+00> : vector<1x16xf32>
    %184 = tpu.matmul %183, %106, %cst_47 {dimension_numbers = #tpu.dot_dimension_numbers<[1], [0], [0], [1], [0, 0, 1, 1], [], []>} : vector<1x64xbf16>, vector<64x16xbf16>, vector<1x16xf32> -> vector<1x16xf32>
    %185 = vector.broadcast %184 : vector<1x16xf32> to vector<12x16xf32>
    %186 = arith.addf %163, %185 : vector<12x16xf32>
    %cst_48 = arith.constant 0.000000e+00 : f32
    %187 = vector.broadcast %cst_48 : f32 to vector<12x16xf32>
    %188 = arith.maximumf %186, %187 : vector<12x16xf32>
    %cst_49 = arith.constant dense<0.000000e+00> : vector<12x1xf32>
    %189 = tpu.matmul %188, %158, %cst_49 {dimension_numbers = #tpu.dot_dimension_numbers<[1], [0], [0], [1], [0, 0, 1, 1], [], []>} : vector<12x16xf32>, vector<16x1xf32>, vector<12x1xf32> -> vector<12x1xf32>
    %190 = vector.broadcast %159 : vector<1x1xf32> to vector<12x1xf32>
    %191 = arith.addf %189, %190 : vector<12x1xf32>
    %cst_50 = arith.constant dense<0xFF800000> : vector<1xf32>
    %192 = vector.multi_reduction <maximumf>, %191, %cst_50 [0] : vector<12x1xf32> to vector<1xf32>
    %193 = vector.shape_cast %192 : vector<1xf32> to vector<1x1xf32>
    %194 = vector.broadcast %193 : vector<1x1xf32> to vector<12x1xf32>
    %195 = arith.subf %191, %194 : vector<12x1xf32>
    %196 = math.exp %195 : vector<12x1xf32>
    %cst_51 = arith.constant dense<0.000000e+00> : vector<1xf32>
    %197 = vector.multi_reduction <add>, %196, %cst_51 [0] : vector<12x1xf32> to vector<1xf32>
    %198 = vector.shape_cast %197 : vector<1xf32> to vector<1x1xf32>
    %199 = tpu.reciprocal %198 {approx = true} : vector<1x1xf32> -> vector<1x1xf32>
    %200 = vector.broadcast %199 : vector<1x1xf32> to vector<12x1xf32>
    %201 = arith.mulf %196, %200 : vector<12x1xf32>
    %202 = vector.broadcast %201 : vector<12x1xf32> to vector<12x64xf32>
    %203 = arith.mulf %202, %102 : vector<12x64xf32>
    %cst_52 = arith.constant dense<0.000000e+00> : vector<64xf32>
    %204 = vector.multi_reduction <add>, %203, %cst_52 [0] : vector<12x64xf32> to vector<64xf32>
    %205 = vector.shape_cast %204 : vector<64xf32> to vector<1x64xf32>
    %206 = arith.addf %205, %182 : vector<1x64xf32>
    %207 = arith.mulf %156, %156 : vector<1x64xf32>
    %cst_53 = arith.constant dense<0.000000e+00> : vector<1xf32>
    %208 = vector.multi_reduction <add>, %207, %cst_53 [1] : vector<1x64xf32> to vector<1xf32>
    %209 = vector.shape_cast %208 : vector<1xf32> to vector<1x1xf32>
    %cst_54 = arith.constant 1.000000e-24 : f32
    %210 = vector.broadcast %cst_54 : f32 to vector<1x1xf32>
    %211 = arith.maximumf %209, %210 : vector<1x1xf32>
    %212 = math.rsqrt %211 : vector<1x1xf32>
    %213 = vector.broadcast %212 : vector<1x1xf32> to vector<1x64xf32>
    %214 = arith.mulf %156, %213 : vector<1x64xf32>
    %215 = vector.extract_strided_slice %2 {offsets = [0, 32], sizes = [64, 16], strides = [1, 1]} : vector<64x64xf32> to vector<64x16xf32>
    %cst_55 = arith.constant dense<0.000000e+00> : vector<1x16xf32>
    %216 = tpu.matmul %214, %215, %cst_55 {dimension_numbers = #tpu.dot_dimension_numbers<[1], [0], [0], [1], [0, 0, 1, 1], [], []>} : vector<1x64xf32>, vector<64x16xf32>, vector<1x16xf32> -> vector<1x16xf32>
    %217 = vector.extract_strided_slice %4 {offsets = [6, 0], sizes = [1, 16], strides = [1, 1]} : vector<16x64xf32> to vector<1x16xf32>
    %218 = arith.addf %216, %217 : vector<1x16xf32>
    %cst_56 = arith.constant 0.000000e+00 : f32
    %219 = vector.broadcast %cst_56 : f32 to vector<1x16xf32>
    %220 = arith.maximumf %218, %219 : vector<1x16xf32>
    %221 = arith.mulf %206, %206 : vector<1x64xf32>
    %cst_57 = arith.constant dense<0.000000e+00> : vector<1xf32>
    %222 = vector.multi_reduction <add>, %221, %cst_57 [1] : vector<1x64xf32> to vector<1xf32>
    %223 = vector.shape_cast %222 : vector<1xf32> to vector<1x1xf32>
    %cst_58 = arith.constant 1.000000e-24 : f32
    %224 = vector.broadcast %cst_58 : f32 to vector<1x1xf32>
    %225 = arith.maximumf %223, %224 : vector<1x1xf32>
    %226 = math.rsqrt %225 : vector<1x1xf32>
    %227 = vector.broadcast %226 : vector<1x1xf32> to vector<1x64xf32>
    %228 = arith.mulf %206, %227 : vector<1x64xf32>
    %229 = vector.extract_strided_slice %2 {offsets = [0, 48], sizes = [64, 16], strides = [1, 1]} : vector<64x64xf32> to vector<64x16xf32>
    %cst_59 = arith.constant dense<0.000000e+00> : vector<1x16xf32>
    %230 = tpu.matmul %228, %229, %cst_59 {dimension_numbers = #tpu.dot_dimension_numbers<[1], [0], [0], [1], [0, 0, 1, 1], [], []>} : vector<1x64xf32>, vector<64x16xf32>, vector<1x16xf32> -> vector<1x16xf32>
    %231 = vector.extract_strided_slice %4 {offsets = [7, 0], sizes = [1, 16], strides = [1, 1]} : vector<16x64xf32> to vector<1x16xf32>
    %232 = arith.addf %230, %231 : vector<1x16xf32>
    %cst_60 = arith.constant 0.000000e+00 : f32
    %233 = vector.broadcast %cst_60 : f32 to vector<1x16xf32>
    %234 = arith.maximumf %232, %233 : vector<1x16xf32>
    %235 = vector.extract_strided_slice %4 {offsets = [8, 0], sizes = [1, 16], strides = [1, 1]} : vector<16x64xf32> to vector<1x16xf32>
    %236 = vector.extract_strided_slice %4 {offsets = [9, 0], sizes = [1, 16], strides = [1, 1]} : vector<16x64xf32> to vector<1x16xf32>
    %cst_61 = arith.constant dense<0.000000e+00> : vector<1xf32>
    %237 = vector.multi_reduction <add>, %220, %cst_61 [1] : vector<1x16xf32> to vector<1xf32>
    %238 = vector.shape_cast %237 : vector<1xf32> to vector<1x1xf32>
    %cst_62 = arith.constant 1.600000e+01 : f32
    %239 = vector.broadcast %cst_62 : f32 to vector<1x1xf32>
    %240 = arith.divf %238, %239 : vector<1x1xf32>
    %241 = vector.broadcast %240 : vector<1x1xf32> to vector<1x16xf32>
    %242 = arith.subf %220, %241 : vector<1x16xf32>
    %243 = arith.mulf %242, %242 : vector<1x16xf32>
    %cst_63 = arith.constant dense<0.000000e+00> : vector<1xf32>
    %244 = vector.multi_reduction <add>, %243, %cst_63 [1] : vector<1x16xf32> to vector<1xf32>
    %245 = vector.shape_cast %244 : vector<1xf32> to vector<1x1xf32>
    %cst_64 = arith.constant 1.600000e+01 : f32
    %246 = vector.broadcast %cst_64 : f32 to vector<1x1xf32>
    %247 = arith.divf %245, %246 : vector<1x1xf32>
    %248 = vector.broadcast %240 : vector<1x1xf32> to vector<1x16xf32>
    %249 = arith.subf %220, %248 : vector<1x16xf32>
    %cst_65 = arith.constant 9.99999974E-6 : f32
    %250 = vector.broadcast %cst_65 : f32 to vector<1x1xf32>
    %251 = arith.addf %247, %250 : vector<1x1xf32>
    %252 = math.rsqrt %251 : vector<1x1xf32>
    %253 = vector.broadcast %252 : vector<1x1xf32> to vector<1x16xf32>
    %254 = arith.mulf %249, %253 : vector<1x16xf32>
    %255 = arith.mulf %254, %235 : vector<1x16xf32>
    %256 = arith.addf %255, %236 : vector<1x16xf32>
    %257 = vector.extract_strided_slice %4 {offsets = [10, 0], sizes = [1, 16], strides = [1, 1]} : vector<16x64xf32> to vector<1x16xf32>
    %258 = vector.extract_strided_slice %4 {offsets = [11, 0], sizes = [1, 16], strides = [1, 1]} : vector<16x64xf32> to vector<1x16xf32>
    %cst_66 = arith.constant dense<0.000000e+00> : vector<1xf32>
    %259 = vector.multi_reduction <add>, %234, %cst_66 [1] : vector<1x16xf32> to vector<1xf32>
    %260 = vector.shape_cast %259 : vector<1xf32> to vector<1x1xf32>
    %cst_67 = arith.constant 1.600000e+01 : f32
    %261 = vector.broadcast %cst_67 : f32 to vector<1x1xf32>
    %262 = arith.divf %260, %261 : vector<1x1xf32>
    %263 = vector.broadcast %262 : vector<1x1xf32> to vector<1x16xf32>
    %264 = arith.subf %234, %263 : vector<1x16xf32>
    %265 = arith.mulf %264, %264 : vector<1x16xf32>
    %cst_68 = arith.constant dense<0.000000e+00> : vector<1xf32>
    %266 = vector.multi_reduction <add>, %265, %cst_68 [1] : vector<1x16xf32> to vector<1xf32>
    %267 = vector.shape_cast %266 : vector<1xf32> to vector<1x1xf32>
    %cst_69 = arith.constant 1.600000e+01 : f32
    %268 = vector.broadcast %cst_69 : f32 to vector<1x1xf32>
    %269 = arith.divf %267, %268 : vector<1x1xf32>
    %270 = vector.broadcast %262 : vector<1x1xf32> to vector<1x16xf32>
    %271 = arith.subf %234, %270 : vector<1x16xf32>
    %cst_70 = arith.constant 9.99999974E-6 : f32
    %272 = vector.broadcast %cst_70 : f32 to vector<1x1xf32>
    %273 = arith.addf %269, %272 : vector<1x1xf32>
    %274 = math.rsqrt %273 : vector<1x1xf32>
    %275 = vector.broadcast %274 : vector<1x1xf32> to vector<1x16xf32>
    %276 = arith.mulf %271, %275 : vector<1x16xf32>
    %277 = arith.mulf %276, %257 : vector<1x16xf32>
    %278 = arith.addf %277, %258 : vector<1x16xf32>
    %279 = vector.extract_strided_slice %3 {offsets = [0, 1], sizes = [16, 3], strides = [1, 1]} : vector<32x4xf32> to vector<16x3xf32>
    %cst_71 = arith.constant dense<0.000000e+00> : vector<1x3xf32>
    %280 = tpu.matmul %256, %279, %cst_71 {dimension_numbers = #tpu.dot_dimension_numbers<[1], [0], [0], [1], [0, 0, 1, 1], [], []>} : vector<1x16xf32>, vector<16x3xf32>, vector<1x3xf32> -> vector<1x3xf32>
    %281 = vector.extract_strided_slice %3 {offsets = [16, 1], sizes = [16, 3], strides = [1, 1]} : vector<32x4xf32> to vector<16x3xf32>
    %cst_72 = arith.constant dense<0.000000e+00> : vector<1x3xf32>
    %282 = tpu.matmul %278, %281, %cst_72 {dimension_numbers = #tpu.dot_dimension_numbers<[1], [0], [0], [1], [0, 0, 1, 1], [], []>} : vector<1x16xf32>, vector<16x3xf32>, vector<1x3xf32> -> vector<1x3xf32>
    %283 = arith.addf %280, %282 : vector<1x3xf32>
    %284 = vector.extract_strided_slice %4 {offsets = [13, 0], sizes = [1, 3], strides = [1, 1]} : vector<16x64xf32> to vector<1x3xf32>
    %285 = arith.addf %283, %284 : vector<1x3xf32>
    %286 = arith.negf %285 : vector<1x3xf32>
    %287 = math.exp %286 : vector<1x3xf32>
    %cst_73 = arith.constant 1.000000e+00 : f32
    %288 = vector.broadcast %cst_73 : f32 to vector<1x3xf32>
    %289 = arith.addf %288, %287 : vector<1x3xf32>
    %290 = arith.divf %288, %289 : vector<1x3xf32>
    %c0_74 = arith.constant 0 : index
    %c0_75 = arith.constant 0 : index
    %291 = vector.load %arg5[%c0_74, %c0_75] : memref<1x3xf32, #tpu.memory_space<vmem>>, vector<1x3xf32>
    tpu.vector_store %arg5[%c0_74, %c0_75], %290 {strides = array<i32>} : memref<1x3xf32, #tpu.memory_space<vmem>>, vector<1x3xf32>,
    return
  }
}

</mosaic_0001>

<llo_original>
// kernel: forward.1
$region0: #{forward.1}
  #allocation0 [shape = 'u32[]', space=smem, size = 0x4, offset = 0x4, fixed_abs, tag = 'smem constant byte address 0x4 - core index']
  #allocation1 [shape = 'u32[144,128]{1,0:T(1,128)}', space=vmem, size = 0x12000, scoped, tag = 'internal scratch']
  %s0 = inlined_call_operand.hbm [shape: f32[16,32], index: 0, kind: input, shape index: {}]
  %s1 = inlined_call_operand.vmem [shape: s32[2,32], index: 1, kind: input, shape index: {}]
  %s2 = inlined_call_operand.hbm [shape: f32[12,48], index: 2, kind: input, shape index: {}]
  %s3 = inlined_call_operand.vmem [shape: s32[2,24], index: 3, kind: input, shape index: {}]
  %s4 = inlined_call_operand.hbm [shape: f32[192,128], index: 4, kind: input, shape index: {}]
  %s5 = inlined_call_operand.hbm [shape: f32[1,3], index: 5, kind: output, shape index: {}]
  %s6 = sld [smem:[#allocation0]]
  $region42: #{forward.1} parent=0
    _
  %s8 = ssub.s32 1, %s6
  %s9 = scalar_select 0, %s8, %s6
  $region1: #{forward.1} parent=0
    #allocation2 [shape = 'u8[8192]{0}', space=vmem, size = 0x2000, scoped, tag = 'input window, operand 0, single buffered']
    #allocation3 [shape = 's32[1]{0}', space=sflag, size = 0x4, scoped, tag = 'scoped memory for forward.1']
    #allocation4 [shape = 's32[1]{0}', space=sflag, size = 0x4, scoped, tag = 'scoped memory for forward.1']
    #allocation5 [shape = 'u8[8192]{0}', space=vmem, size = 0x2000, scoped, tag = 'input window, operand 2, single buffered']
    #allocation6 [shape = 's32[1]{0}', space=sflag, size = 0x4, scoped, tag = 'scoped memory for forward.1']
    #allocation7 [shape = 'u8[98304]{0}', space=vmem, size = 0x18000, scoped, tag = 'input window, operand 4, single buffered']
    #allocation8 [shape = 'u8[512]{0}', space=vmem, size = 0x400, scoped, tag = 'output window, operand 0, single buffered']
    %10 = vsyncpa [#allocation3], 0
    %11 = vsyncpa [#allocation6], 0
    %12 = vsyncpa [#allocation4], 0
    // Predicated region
    $region2: #{forward.1} parent=1 // pred_check
      _
    $region3: #{forward.1} parent=1 // pred_check_branch
      %14 = sbr.rel (0) target = $region5
    $region4: #{forward.1} parent=1 // pred_region
      %s16 = ssub.s32 256, 256
      %17 = vsyncadd [#allocation3], %s16
      %s18 = sshll.u32 [#allocation2], 4
      %s19 = int_to_ptr.vmem [resolvable:$true] %s18
      %24 = dma.hbm_to_vmem [thread:$0]  %s0, 256, %s19, [#allocation3], 128, 128, 8
    $region5: #{forward.1} parent=1 // pred_fallthru
      _
    // Predicated region
    $region6: #{forward.1} parent=1 // pred_check
      _
    $region7: #{forward.1} parent=1 // pred_check_branch
      %26 = sbr.rel (0) target = $region9
    $region8: #{forward.1} parent=1 // pred_region
      _
    $region9: #{forward.1} parent=1 // pred_fallthru
      _
    // Predicated region
    $region10: #{forward.1} parent=1 // pred_check
      _
    $region11: #{forward.1} parent=1 // pred_check_branch
      %28 = sbr.rel (0) target = $region13
    $region12: #{forward.1} parent=1 // pred_region
      %s30 = ssub.s32 256, 256
      %31 = vsyncadd [#allocation6], %s30
      %s32 = sshll.u32 [#allocation5], 4
      %s33 = int_to_ptr.vmem [resolvable:$true] %s32
      %38 = dma.hbm_to_vmem [thread:$0]  %s2, 256, %s33, [#allocation6], 128, 128, 8
    $region13: #{forward.1} parent=1 // pred_fallthru
      _
    // Predicated region
    $region14: #{forward.1} parent=1 // pred_check
      _
    $region15: #{forward.1} parent=1 // pred_check_branch
      %40 = sbr.rel (0) target = $region17
    $region16: #{forward.1} parent=1 // pred_region
      _
    $region17: #{forward.1} parent=1 // pred_fallthru
      _
    // Predicated region
    $region18: #{forward.1} parent=1 // pred_check
      _
    $region19: #{forward.1} parent=1 // pred_check_branch
      %42 = sbr.rel (0) target = $region21
    $region20: #{forward.1} parent=1 // pred_region
      %s44 = ssub.s32 3072, 3072
      %45 = vsyncadd [#allocation6], %s44
      %s46 = sshll.u32 [#allocation7], 4
      %s47 = int_to_ptr.vmem [resolvable:$true] %s46
      %52 = dma.hbm_to_vmem [thread:$0]  %s4, 3072, %s47, [#allocation6], 128, 128, 8
    $region21: #{forward.1} parent=1 // pred_fallthru
      _
    // Predicated region
    $region22: #{forward.1} parent=1 // pred_check
      _
    $region23: #{forward.1} parent=1 // pred_check_branch
      %54 = sbr.rel (0) target = $region25
    $region24: #{forward.1} parent=1 // pred_region
      %55 = dma.done [#allocation3], 256
    $region25: #{forward.1} parent=1 // pred_fallthru
      _
    // Predicated region
    $region26: #{forward.1} parent=1 // pred_check
      _
    $region27: #{forward.1} parent=1 // pred_check_branch
      %57 = sbr.rel (0) target = $region29
    $region28: #{forward.1} parent=1 // pred_region
      %58 = dma.done [#allocation6], 256
    $region29: #{forward.1} parent=1 // pred_fallthru
      _
    // Predicated region
    $region30: #{forward.1} parent=1 // pred_check
      _
    $region31: #{forward.1} parent=1 // pred_check_branch
      %60 = sbr.rel (0) target = $region33
    $region32: #{forward.1} parent=1 // pred_region
      %61 = dma.done [#allocation6], 3072
    $region33: #{forward.1} parent=1 // pred_fallthru
      _
    %v63 = vld [vmem:[#allocation7] sm:$0xff]
    %v64 = vld [vmem:[#allocation7 + $0x8] sm:$0xff]
    %v65 = vld [vmem:[#allocation7 + $0x10] sm:$0xff]
    %v66 = vld [vmem:[#allocation7 + $0x18] sm:$0xff]
    %v67 = vld [vmem:[#allocation7 + $0x20] sm:$0xff]
    %v68 = vld [vmem:[#allocation7 + $0x28] sm:$0xff]
    %v69 = vld [vmem:[#allocation7 + $0x30] sm:$0xff]
    %v70 = vld [vmem:[#allocation7 + $0x38] sm:$0xff]
    %v71 = vld [vmem:[#allocation7 + $0x40] sm:$0xff]
    %v72 = vld [vmem:[#allocation7 + $0x48] sm:$0xff]
    %v73 = vld [vmem:[#allocation7 + $0x50] sm:$0xff]
    %v74 = vld [vmem:[#allocation7 + $0x58] sm:$0xff]
    %v75 = vld [vmem:[#allocation7 + $0x60] sm:$0xff]
    %v76 = vld [vmem:[#allocation7 + $0x68] sm:$0xff]
    %v77 = vld [vmem:[#allocation7 + $0x70] sm:$0xff]
    %v78 = vld [vmem:[#allocation7 + $0x78] sm:$0xff]
    %v79 = vld [vmem:[#allocation7 + $0x80] sm:$0xff]
    %v80 = vld [vmem:[#allocation7 + $0x88] sm:$0xff]
    %v81 = vld [vmem:[#allocation7 + $0x90] sm:$0xff]
    %v82 = vld [vmem:[#allocation7 + $0x98] sm:$0xff]
    %v83 = vld [vmem:[#allocation7 + $0xa0] sm:$0xff]
    %v84 = vld [vmem:[#allocation7 + $0xa8] sm:$0xff]
    %v85 = vld [vmem:[#allocation7 + $0xb0] sm:$0xff]
    %v86 = vld [vmem:[#allocation7 + $0xb8] sm:$0xff]
    %v87 = vpack.c.bf16 %v64, %v63
    %v88 = vpack.c.bf16 %v66, %v65
    %v89 = vpack.c.bf16 %v68, %v67
    %v90 = vpack.c.bf16 %v70, %v69
    %v91 = vpack.c.bf16 %v72, %v71
    %v92 = vld [vmem:[#allocation2] sm:$0xff]
    %v93 = vld [vmem:[#allocation2 + $0x8] sm:$0xff]
    %v94 = vpack.c.bf16 %v93, %v92
    %vm95 = vcmask 261120
    %v97 = vsel %vm95, %v94, 0
    %99 = vmatprep.subr.bf16.mxu0 0
    %100 = vmatpush1.bf16.msra.mxu0 %v87
    %101 = vmatprep.subr.bf16.mxu0 0
    %102 = vmatpush1.bf16.msra.mxu0 %v88
    %103 = vmatprep.subr.bf16.mxu0 0
    %104 = vmatpush1.bf16.msra.mxu0 0
    %105 = vmatprep.subr.bf16.mxu0 0
    %106 = vmatpush1.bf16.msra.mxu0 0
    %107 = vmatprep.subr.bf16.mxu0 0
    %108 = vmatpush1.bf16.msra.mxu0 0
    %109 = vmatprep.subr.bf16.mxu0 0
    %110 = vmatpush1.bf16.msra.mxu0 0
    %111 = vmatprep.subr.bf16.mxu0 0
    %112 = vmatpush1.bf16.msra.mxu0 0
    %113 = vmatprep.subr.bf16.mxu0 0
    %114 = vmatpush1.bf16.msra.mxu0 0
    %115 = vmatprep.subr.bf16.mxu0 0
    %116 = vmatpush1.bf16.msra.mxu0 0
    %117 = vmatprep.subr.bf16.mxu0 0
    %118 = vmatpush1.bf16.msra.mxu0 0
    %119 = vmatprep.subr.bf16.mxu0 0
    %120 = vmatpush1.bf16.msra.mxu0 0
    %121 = vmatprep.subr.bf16.mxu0 0
    %122 = vmatpush1.bf16.msra.mxu0 0
    %123 = vmatprep.subr.bf16.mxu0 0
    %124 = vmatpush1.bf16.msra.mxu0 0
    %125 = vmatprep.subr.bf16.mxu0 0
    %126 = vmatpush1.bf16.msra.mxu0 0
    %127 = vmatprep.subr.bf16.mxu0 0
    %128 = vmatpush1.bf16.msra.mxu0 0
    %129 = vmatprep.subr.bf16.mxu0 0
    %130 = vmatpush1.bf16.msra.mxu0 0
    %131 = vmatprep.mubr.bf16.mxu0 0
    %132 = vmatmul.mubr.bf16.gmra.mrb[0].mxu0 %v97
    %v133 = vpop.f32.mrb[0].mxu0
    %v134 = vadd.f32 0.0, %v133
    %v135 = vpop.f32.mrb[0].mxu0
    %v136 = vpop.f32.mrb[0].mxu0
    %v137 = vadd.f32 0.0, %v136
    %v138 = vpop.f32.mrb[0].mxu0
    %139 = vdwg.mxu0
    %v140 = vld [vmem:[%s1] sm:$0x3]
    %v141 = vlaneseq
    %v142 = vshrl.u32 %v141, 7
    %v143 = vadd.s32 %v142, 8
    %v144 = vlaneseq
    %v145 = vshrl.u32 %v144, 7
    %v146 = vsub.s32 0, %v145
    %v147 = vrot.slane %v140, %v146
    %vm148 = vcmp.eq.s32.totalorder %v142, %v147
    %vm149 = vcmp.eq.s32.totalorder %v143, %v147
    %v150 = vsel %vm148, 1, 0
    %v151 = vsel %vm149, 1, 0
    %v152 = vcvt.s32.f32 %v150
    %v153 = vcvt.s32.f32 %v151
    %v154 = vpack.c.bf16 %v153, %v152
    %v155 = vlaneseq
    %v156 = vshrl.u32 %v155, 7
    %v157 = vsub.s32 1, %v156
    %v158 = vrot.slane %v140, %v157
    %vm159 = vcmp.eq.s32.totalorder %v142, %v158
    %vm160 = vcmp.eq.s32.totalorder %v143, %v158
    %v161 = vsel %vm159, 1, 0
    %v162 = vsel %vm160, 1, 0
    %v163 = vcvt.s32.f32 %v161
    %v164 = vcvt.s32.f32 %v162
    %v165 = vpack.c.bf16 %v164, %v163
    %v167 = vsel %vm95, %v165, 0
    %v170 = vsel %vm95, %v154, 0
    %172 = vmatprep.subr.bf16.mxu0 0
    %173 = vmatpush1.bf16.xpose.msra.mxu0 %v170
    %174 = vmatprep.subr.bf16.mxu0 0
    %175 = vmatpush1.bf16.xpose.msra.mxu0 0
    %176 = vmatprep.subr.bf16.mxu0 0
    %177 = vmatpush1.bf16.xpose.msra.mxu0 0
    %178 = vmatprep.subr.bf16.mxu0 0
    %179 = vmatpush1.bf16.xpose.msra.mxu0 0
    %180 = vmatprep.subr.bf16.mxu0 0
    %181 = vmatpush1.bf16.xpose.msra.mxu0 0
    %182 = vmatprep.subr.bf16.mxu0 0
    %183 = vmatpush1.bf16.xpose.msra.mxu0 0
    %184 = vmatprep.subr.bf16.mxu0 0
    %185 = vmatpush1.bf16.xpose.msra.mxu0 0
    %186 = vmatprep.subr.bf16.mxu0 0
    %187 = vmatpush1.bf16.xpose.msra.mxu0 0
    %188 = vmatprep.subr.bf16.mxu0 0
    %189 = vmatpush1.bf16.xpose.msra.mxu0 0
    %190 = vmatprep.subr.bf16.mxu0 0
    %191 = vmatpush1.bf16.xpose.msra.mxu0 0
    %192 = vmatprep.subr.bf16.mxu0 0
    %193 = vmatpush1.bf16.xpose.msra.mxu0 0
    %194 = vmatprep.subr.bf16.mxu0 0
    %195 = vmatpush1.bf16.xpose.msra.mxu0 0
    %196 = vmatprep.subr.bf16.mxu0 0
    %197 = vmatpush1.bf16.xpose.msra.mxu0 0
    %198 = vmatprep.subr.bf16.mxu0 0
    %199 = vmatpush1.bf16.xpose.msra.mxu0 0
    %200 = vmatprep.subr.bf16.mxu0 0
    %201 = vmatpush1.bf16.xpose.msra.mxu0 0
    %202 = vmatprep.subr.bf16.mxu0 0
    %203 = vmatpush1.bf16.xpose.msra.mxu0 0
    %204 = vmatprep.mubr.bf16.mxu0 0
    %205 = vmatmul.mubr.bf16.gmra.mrb[0].mxu0 %v167
    %v206 = vpop.f32.mrb[0].mxu0
    %v207 = vadd.f32 0.0, %v206
    %v208 = vpop.f32.mrb[0].mxu0
    %v209 = vpop.f32.mrb[0].mxu0
    %v210 = vadd.f32 0.0, %v209
    %v211 = vpop.f32.mrb[0].mxu0
    %212 = vdwg.mxu0
    %vm213 = vcmask 130048
    %v214 = vsel %vm213, %v207, 0.0
    %215 = vadd.xlane.f32.xlu0 %v214
    %v216 = vpop.xlane.xlu0 %215
    %v217 = vsel %vm213, %v210, 0.0
    %218 = vadd.xlane.f32.xlu0 %v217
    %v219 = vpop.xlane.xlu0 %218
    %v220 = vmax.f32 %v216, 1.0
    %v221 = vmax.f32 %v219, 1.0
    %v222 = vrcp.pop %v220
    %v223 = vrcp.pop %v221
    %v224 = vmul.f32 %v207, %v222
    %v225 = vmul.f32 %v210, %v223
    %v226 = vpack.c.bf16 %v225, %v224
    %v227 = vpack.c.bf16 %v137, %v134
    %230 = vrot.lane.b32.xlu0 %v134, 64
    %v231 = vpop.permute.xlu0 %230
    %232 = vrot.lane.b32.xlu0 %v137, 64
    %v233 = vpop.permute.xlu0 %232
    %v237 = vsel %vm213, %v226, 0
    %239 = vmatprep.subr.bf16.mxu0 0
    %240 = vmatpush1.bf16.msra.mxu0 %v227
    %241 = vmatprep.subr.bf16.mxu0 0
    %242 = vmatpush1.bf16.msra.mxu0 0
    %243 = vmatprep.subr.bf16.mxu0 0
    %244 = vmatpush1.bf16.msra.mxu0 0
    %245 = vmatprep.subr.bf16.mxu0 0
    %246 = vmatpush1.bf16.msra.mxu0 0
    %247 = vmatprep.subr.bf16.mxu0 0
    %248 = vmatpush1.bf16.msra.mxu0 0
    %249 = vmatprep.subr.bf16.mxu0 0
    %250 = vmatpush1.bf16.msra.mxu0 0
    %251 = vmatprep.subr.bf16.mxu0 0
    %252 = vmatpush1.bf16.msra.mxu0 0
    %253 = vmatprep.subr.bf16.mxu0 0
    %254 = vmatpush1.bf16.msra.mxu0 0
    %255 = vmatprep.subr.bf16.mxu0 0
    %256 = vmatpush1.bf16.msra.mxu0 0
    %257 = vmatprep.subr.bf16.mxu0 0
    %258 = vmatpush1.bf16.msra.mxu0 0
    %259 = vmatprep.subr.bf16.mxu0 0
    %260 = vmatpush1.bf16.msra.mxu0 0
    %261 = vmatprep.subr.bf16.mxu0 0
    %262 = vmatpush1.bf16.msra.mxu0 0
    %263 = vmatprep.subr.bf16.mxu0 0
    %264 = vmatpush1.bf16.msra.mxu0 0
    %265 = vmatprep.subr.bf16.mxu0 0
    %266 = vmatpush1.bf16.msra.mxu0 0
    %267 = vmatprep.subr.bf16.mxu0 0
    %268 = vmatpush1.bf16.msra.mxu0 0
    %269 = vmatprep.subr.bf16.mxu0 0
    %270 = vmatpush1.bf16.msra.mxu0 0
    %271 = vmatprep.mubr.bf16.mxu0 0
    %272 = vmatmul.mubr.bf16.gmra.mrb[0].mxu0 %v237
    %v273 = vpop.f32.mrb[0].mxu0
    %v274 = vadd.f32 %v231, %v273
    %v275 = vpop.f32.mrb[0].mxu0
    %v276 = vpop.f32.mrb[0].mxu0
    %v277 = vadd.f32 %v233, %v276
    %v278 = vpop.f32.mrb[0].mxu0
    %279 = vdwg.mxu0
    %v280 = vlaneseq
    %v281 = vshrl.u32 %v280, 7
    %v282 = vsub.s32 0, %v281
    %v283 = vrot.slane %v85, %v282
    %v284 = vadd.f32 %v274, %v283
    %v285 = vadd.f32 %v277, %v283
    %v286 = vmax.f32 %v284, 0.0
    %v287 = vmax.f32 %v285, 0.0
    %v288 = vld [vmem:[#allocation5] sm:$0xff]
    %v289 = vld [vmem:[#allocation5 + $0x8] sm:$0xf]
    %v290 = vpack.c.bf16 %v289, %v288
    %vm291 = vcmask 392192
    %v293 = vsel %vm291, %v290, 0
    %295 = vmatprep.subr.bf16.mxu0 0
    %296 = vmatpush1.bf16.msra.mxu0 %v89
    %297 = vmatprep.subr.bf16.mxu0 0
    %298 = vmatpush1.bf16.msra.mxu0 %v90
    %299 = vmatprep.subr.bf16.mxu0 0
    %300 = vmatpush1.bf16.msra.mxu0 %v91
    %301 = vmatprep.subr.bf16.mxu0 0
    %302 = vmatpush1.bf16.msra.mxu0 0
    %303 = vmatprep.subr.bf16.mxu0 0
    %304 = vmatpush1.bf16.msra.mxu0 0
    %305 = vmatprep.subr.bf16.mxu0 0
    %306 = vmatpush1.bf16.msra.mxu0 0
    %307 = vmatprep.subr.bf16.mxu0 0
    %308 = vmatpush1.bf16.msra.mxu0 0
    %309 = vmatprep.subr.bf16.mxu0 0
    %310 = vmatpush1.bf16.msra.mxu0 0
    %311 = vmatprep.subr.bf16.mxu0 0
    %312 = vmatpush1.bf16.msra.mxu0 0
    %313 = vmatprep.subr.bf16.mxu0 0
    %314 = vmatpush1.bf16.msra.mxu0 0
    %315 = vmatprep.subr.bf16.mxu0 0
    %316 = vmatpush1.bf16.msra.mxu0 0
    %317 = vmatprep.subr.bf16.mxu0 0
    %318 = vmatpush1.bf16.msra.mxu0 0
    %319 = vmatprep.subr.bf16.mxu0 0
    %320 = vmatpush1.bf16.msra.mxu0 0
    %321 = vmatprep.subr.bf16.mxu0 0
    %322 = vmatpush1.bf16.msra.mxu0 0
    %323 = vmatprep.subr.bf16.mxu0 0
    %324 = vmatpush1.bf16.msra.mxu0 0
    %325 = vmatprep.subr.bf16.mxu0 0
    %326 = vmatpush1.bf16.msra.mxu0 0
    %327 = vmatprep.mubr.bf16.mxu0 0
    %328 = vmatmul.mubr.bf16.gmra.mrb[0].mxu0 %v293
    %v329 = vpop.f32.mrb[0].mxu0
    %v330 = vadd.f32 0.0, %v329
    %v331 = vpop.f32.mrb[0].mxu0
    %v332 = vpop.f32.mrb[0].mxu0
    %v333 = vadd.f32 0.0, %v332
    %v334 = vpop.f32.mrb[0].mxu0
    %335 = vdwg.mxu0
    %v336 = vld [vmem:[%s3] sm:$0x3]
    %v337 = vlaneseq
    %v338 = vshrl.u32 %v337, 7
    %v339 = vsub.s32 0, %v338
    %v340 = vrot.slane %v336, %v339
    %vm341 = vcmp.eq.s32.totalorder %v142, %v340
    %vm342 = vcmp.eq.s32.totalorder %v143, %v340
    %v343 = vsel %vm341, 1, 0
    %v344 = vsel %vm342, 1, 0
    %v345 = vcvt.s32.f32 %v343
    %v346 = vcvt.s32.f32 %v344
    %v347 = vpack.c.bf16 %v346, %v345
    %v348 = vlaneseq
    %v349 = vshrl.u32 %v348, 7
    %v350 = vsub.s32 1, %v349
    %v351 = vrot.slane %v336, %v350
    %vm352 = vcmp.eq.s32.totalorder %v142, %v351
    %vm353 = vcmp.eq.s32.totalorder %v143, %v351
    %v354 = vsel %vm352, 1, 0
    %v355 = vsel %vm353, 1, 0
    %v356 = vcvt.s32.f32 %v354
    %v357 = vcvt.s32.f32 %v355
    %v358 = vpack.c.bf16 %v357, %v356
    %vm359 = vcmask 195584
    %v361 = vsel %vm359, %v358, 0
    %v364 = vsel %vm359, %v347, 0
    %366 = vmatprep.subr.bf16.mxu0 0
    %367 = vmatpush1.bf16.xpose.msra.mxu0 %v364
    %368 = vmatprep.subr.bf16.mxu0 0
    %369 = vmatpush1.bf16.xpose.msra.mxu0 0
    %370 = vmatprep.subr.bf16.mxu0 0
    %371 = vmatpush1.bf16.xpose.msra.mxu0 0
    %372 = vmatprep.subr.bf16.mxu0 0
    %373 = vmatpush1.bf16.xpose.msra.mxu0 0
    %374 = vmatprep.subr.bf16.mxu0 0
    %375 = vmatpush1.bf16.xpose.msra.mxu0 0
    %376 = vmatprep.subr.bf16.mxu0 0
    %377 = vmatpush1.bf16.xpose.msra.mxu0 0
    %378 = vmatprep.subr.bf16.mxu0 0
    %379 = vmatpush1.bf16.xpose.msra.mxu0 0
    %380 = vmatprep.subr.bf16.mxu0 0
    %381 = vmatpush1.bf16.xpose.msra.mxu0 0
    %382 = vmatprep.subr.bf16.mxu0 0
    %383 = vmatpush1.bf16.xpose.msra.mxu0 0
    %384 = vmatprep.subr.bf16.mxu0 0
    %385 = vmatpush1.bf16.xpose.msra.mxu0 0
    %386 = vmatprep.subr.bf16.mxu0 0
    %387 = vmatpush1.bf16.xpose.msra.mxu0 0
    %388 = vmatprep.subr.bf16.mxu0 0
    %389 = vmatpush1.bf16.xpose.msra.mxu0 0
    %390 = vmatprep.subr.bf16.mxu0 0
    %391 = vmatpush1.bf16.xpose.msra.mxu0 0
    %392 = vmatprep.subr.bf16.mxu0 0
    %393 = vmatpush1.bf16.xpose.msra.mxu0 0
    %394 = vmatprep.subr.bf16.mxu0 0
    %395 = vmatpush1.bf16.xpose.msra.mxu0 0
    %396 = vmatprep.subr.bf16.mxu0 0
    %397 = vmatpush1.bf16.xpose.msra.mxu0 0
    %398 = vmatprep.mubr.bf16.mxu0 0
    %399 = vmatmul.mubr.bf16.gmra.mrb[0].mxu0 %v361
    %v400 = vpop.f32.mrb[0].mxu0
    %v401 = vadd.f32 0.0, %v400
    %v402 = vpop.f32.mrb[0].mxu0
    %v403 = vpop.f32.mrb[0].mxu0
    %v404 = vadd.f32 0.0, %v403
    %v405 = vpop.f32.mrb[0].mxu0
    %406 = vdwg.mxu0
    %vm407 = vcmask 97280
    %v408 = vsel %vm407, %v401, 0.0
    %409 = vadd.xlane.f32.xlu0 %v408
    %v410 = vpop.xlane.xlu0 %409
    %vm411 = vcmask 93184
    %v412 = vsel %vm411, %v404, 0.0
    %413 = vadd.xlane.f32.xlu0 %v412
    %v414 = vpop.xlane.xlu0 %413
    %v415 = vmax.f32 %v410, 1.0
    %v416 = vmax.f32 %v414, 1.0
    %v417 = vrcp.pop %v415
    %v418 = vrcp.pop %v416
    %v419 = vmul.f32 %v401, %v417
    %v420 = vmul.f32 %v404, %v418
    %v421 = vpack.c.bf16 %v420, %v419
    %v422 = vpack.c.bf16 %v333, %v330
    %425 = vrot.lane.b32.xlu0 %v330, 64
    %v426 = vpop.permute.xlu0 %425
    %427 = vrot.lane.b32.xlu0 %v333, 64
    %v428 = vpop.permute.xlu0 %427
    %v432 = vsel %vm407, %v421, 0
    %vm434 = vcmask 1045504
    %v436 = vsel %vm434, %v422, 0
    %438 = vmatprep.subr.bf16.mxu0 0
    %439 = vmatpush1.bf16.msra.mxu0 %v436
    %440 = vmatprep.subr.bf16.mxu0 0
    %441 = vmatpush1.bf16.msra.mxu0 0
    %442 = vmatprep.subr.bf16.mxu0 0
    %443 = vmatpush1.bf16.msra.mxu0 0
    %444 = vmatprep.subr.bf16.mxu0 0
    %445 = vmatpush1.bf16.msra.mxu0 0
    %446 = vmatprep.subr.bf16.mxu0 0
    %447 = vmatpush1.bf16.msra.mxu0 0
    %448 = vmatprep.subr.bf16.mxu0 0
    %449 = vmatpush1.bf16.msra.mxu0 0
    %450 = vmatprep.subr.bf16.mxu0 0
    %451 = vmatpush1.bf16.msra.mxu0 0
    %452 = vmatprep.subr.bf16.mxu0 0
    %453 = vmatpush1.bf16.msra.mxu0 0
    %454 = vmatprep.subr.bf16.mxu0 0
    %455 = vmatpush1.bf16.msra.mxu0 0
    %456 = vmatprep.subr.bf16.mxu0 0
    %457 = vmatpush1.bf16.msra.mxu0 0
    %458 = vmatprep.subr.bf16.mxu0 0
    %459 = vmatpush1.bf16.msra.mxu0 0
    %460 = vmatprep.subr.bf16.mxu0 0
    %461 = vmatpush1.bf16.msra.mxu0 0
    %462 = vmatprep.subr.bf16.mxu0 0
    %463 = vmatpush1.bf16.msra.mxu0 0
    %464 = vmatprep.subr.bf16.mxu0 0
    %465 = vmatpush1.bf16.msra.mxu0 0
    %466 = vmatprep.subr.bf16.mxu0 0
    %467 = vmatpush1.bf16.msra.mxu0 0
    %468 = vmatprep.subr.bf16.mxu0 0
    %469 = vmatpush1.bf16.msra.mxu0 0
    %470 = vmatprep.mubr.bf16.mxu0 0
    %471 = vmatmul.mubr.bf16.gmra.mrb[0].mxu0 %v432
    %v472 = vpop.f32.mrb[0].mxu0
    %v473 = vadd.f32 %v426, %v472
    %v474 = vpop.f32.mrb[0].mxu0
    %v475 = vpop.f32.mrb[0].mxu0
    %v476 = vadd.f32 %v428, %v475
    %v477 = vpop.f32.mrb[0].mxu0
    %478 = vdwg.mxu0
    %v479 = vlaneseq
    %v480 = vshrl.u32 %v479, 7
    %v481 = vsub.s32 1, %v480
    %v482 = vrot.slane %v85, %v481
    %v483 = vadd.f32 %v473, %v482
    %v484 = vadd.f32 %v476, %v482
    %v485 = vmax.f32 %v483, 0.0
    %v486 = vmax.f32 %v484, 0.0
    %vm487 = vcmask 523264
    %v488 = vsel %vm487, %v485, 0.0
    %489 = vadd.xlane.f32.xlu0 %v488
    %v490 = vpop.xlane.xlu0 %489
    %vm491 = vcmask 519168
    %v492 = vsel %vm491, %v486, 0.0
    %493 = vadd.xlane.f32.xlu0 %v492
    %v494 = vpop.xlane.xlu0 %493
    %v495 = vrcp.pop 64.0
    %v496 = vmul.f32 %v490, %v495
    %v497 = vmul.f32 %v494, %v495
    %v498 = vsub.f32 %v485, %v496
    %v499 = vsub.f32 %v486, %v497
    %v500 = vmul.f32 %v498, %v498
    %v501 = vmul.f32 %v499, %v499
    %v502 = vsel %vm487, %v500, 0.0
    %503 = vadd.xlane.f32.xlu0 %v502
    %v504 = vpop.xlane.xlu0 %503
    %v505 = vsel %vm491, %v501, 0.0
    %506 = vadd.xlane.f32.xlu0 %v505
    %v507 = vpop.xlane.xlu0 %506
    %v508 = vmul.f32 %v504, %v495
    %v509 = vmul.f32 %v507, %v495
    %v510 = vadd.f32 %v508, 1e-05
    %v511 = vadd.f32 %v509, 1e-05
    %v512 = vrsqrt.pop %v510
    %v513 = vrsqrt.pop %v511
    %v514 = vmul.f32 %v498, %v512
    %v515 = vmul.f32 %v499, %v513
    %v516 = vlaneseq
    %v517 = vshrl.u32 %v516, 7
    %v518 = vsub.s32 2, %v517
    %v519 = vrot.slane %v85, %v518
    %v520 = vmul.f32 %v514, %v519
    %v521 = vmul.f32 %v515, %v519
    %v522 = vlaneseq
    %v523 = vshrl.u32 %v522, 7
    %v524 = vsub.s32 3, %v523
    %v525 = vrot.slane %v85, %v524
    %v526 = vadd.f32 %v520, %v525
    %v527 = vadd.f32 %v521, %v525
    %v528 = vpack.c.bf16 %v74, %v73
    %v529 = vpack.c.bf16 %v76, %v75
    %v530 = vpack.c.bf16 %v78, %v77
    %v531 = vpack.c.bf16 %v80, %v79
    %v532 = vpack.c.bf16 %v287, %v286
    %v533 = vlaneseq
    %v534 = vshrl.u32 %v533, 7
    %v535 = vsub.s32 4, %v534
    %v536 = vrot.slane %v85, %v535
    %v538 = vsel %vm487, %v532, 0
    %540 = vmatprep.subr.bf16.mxu0 0
    %541 = vmatpush1.bf16.msra.mxu0 %v528
    %542 = vmatprep.subr.bf16.mxu0 0
    %543 = vmatpush1.bf16.msra.mxu0 %v529
    %544 = vmatprep.subr.bf16.mxu0 0
    %545 = vmatpush1.bf16.msra.mxu0 %v530
    %546 = vmatprep.subr.bf16.mxu0 0
    %547 = vmatpush1.bf16.msra.mxu0 %v531
    %548 = vmatprep.subr.bf16.mxu0 0
    %549 = vmatpush1.bf16.msra.mxu0 0
    %550 = vmatprep.subr.bf16.mxu0 0
    %551 = vmatpush1.bf16.msra.mxu0 0
    %552 = vmatprep.subr.bf16.mxu0 0
    %553 = vmatpush1.bf16.msra.mxu0 0
    %554 = vmatprep.subr.bf16.mxu0 0
    %555 = vmatpush1.bf16.msra.mxu0 0
    %556 = vmatprep.subr.bf16.mxu0 0
    %557 = vmatpush1.bf16.msra.mxu0 0
    %558 = vmatprep.subr.bf16.mxu0 0
    %559 = vmatpush1.bf16.msra.mxu0 0
    %560 = vmatprep.subr.bf16.mxu0 0
    %561 = vmatpush1.bf16.msra.mxu0 0
    %562 = vmatprep.subr.bf16.mxu0 0
    %563 = vmatpush1.bf16.msra.mxu0 0
    %564 = vmatprep.subr.bf16.mxu0 0
    %565 = vmatpush1.bf16.msra.mxu0 0
    %566 = vmatprep.subr.bf16.mxu0 0
    %567 = vmatpush1.bf16.msra.mxu0 0
    %568 = vmatprep.subr.bf16.mxu0 0
    %569 = vmatpush1.bf16.msra.mxu0 0
    %570 = vmatprep.subr.bf16.mxu0 0
    %571 = vmatpush1.bf16.msra.mxu0 0
    %572 = vmatprep.mubr.bf16.mxu0 0
    %573 = vmatmul.mubr.bf16.gmra.mrb[0].mxu0 %v538
    %v574 = vpop.f32.mrb[0].mxu0
    %v575 = vadd.f32 %v536, %v574
    %v576 = vpop.f32.mrb[0].mxu0
    %v577 = vpop.f32.mrb[0].mxu0
    %v578 = vadd.f32 %v536, %v577
    %v579 = vpop.f32.mrb[0].mxu0
    %580 = vdwg.mxu0
    %v581 = vmax.f32 %v575, 0.0
    %v582 = vmax.f32 %v578, 0.0
    %v583 = vlaneseq
    %v584 = vshrl.u32 %v583, 7
    %v585 = vsub.s32 4, %v584
    %v586 = vrot.slane %v86, %v585
    %v588 = vsel %vm213, %v581, 0
    %v591 = vsel %vm213, %v582, 0
    %593 = vmatprep.subr.mxu0 0.0
    %594 = vmatpush1.msra.mxu0 %v81
    %595 = vmatprep.subr.mxu0 0.0
    %596 = vmatpush1.msra.mxu0 %v82
    %597 = vmatprep.subr.mxu0 0.0
    %598 = vmatpush1.msra.mxu0 0.0
    %599 = vmatprep.subr.mxu0 0.0
    %600 = vmatpush1.msra.mxu0 0.0
    %601 = vmatprep.subr.mxu0 0.0
    %602 = vmatpush1.msra.mxu0 0.0
    %603 = vmatprep.subr.mxu0 0.0
    %604 = vmatpush1.msra.mxu0 0.0
    %605 = vmatprep.subr.mxu0 0.0
    %606 = vmatpush1.msra.mxu0 0.0
    %607 = vmatprep.subr.mxu0 0.0
    %608 = vmatpush1.msra.mxu0 0.0
    %609 = vmatprep.subr.mxu0 0.0
    %610 = vmatpush1.msra.mxu0 0.0
    %611 = vmatprep.subr.mxu0 0.0
    %612 = vmatpush1.msra.mxu0 0.0
    %613 = vmatprep.subr.mxu0 0.0
    %614 = vmatpush1.msra.mxu0 0.0
    %615 = vmatprep.subr.mxu0 0.0
    %616 = vmatpush1.msra.mxu0 0.0
    %617 = vmatprep.subr.mxu0 0.0
    %618 = vmatpush1.msra.mxu0 0.0
    %619 = vmatprep.subr.mxu0 0.0
    %620 = vmatpush1.msra.mxu0 0.0
    %621 = vmatprep.subr.mxu0 0.0
    %622 = vmatpush1.msra.mxu0 0.0
    %623 = vmatprep.subr.mxu0 0.0
    %624 = vmatpush1.msra.mxu0 0.0
    %625 = vmatprep.subr.mxu0 0.0
    %626 = vmatpush1.msra.mxu0 0.0
    %627 = vmatprep.subr.mxu0 0.0
    %628 = vmatpush1.msra.mxu0 0.0
    %629 = vmatprep.subr.mxu0 0.0
    %630 = vmatpush1.msra.mxu0 0.0
    %631 = vmatprep.subr.mxu0 0.0
    %632 = vmatpush1.msra.mxu0 0.0
    %633 = vmatprep.subr.mxu0 0.0
    %634 = vmatpush1.msra.mxu0 0.0
    %635 = vmatprep.subr.mxu0 0.0
    %636 = vmatpush1.msra.mxu0 0.0
    %637 = vmatprep.subr.mxu0 0.0
    %638 = vmatpush1.msra.mxu0 0.0
    %639 = vmatprep.subr.mxu0 0.0
    %640 = vmatpush1.msra.mxu0 0.0
    %641 = vmatprep.subr.mxu0 0.0
    %642 = vmatpush1.msra.mxu0 0.0
    %643 = vmatprep.subr.mxu0 0.0
    %644 = vmatpush1.msra.mxu0 0.0
    %645 = vmatprep.subr.mxu0 0.0
    %646 = vmatpush1.msra.mxu0 0.0
    %647 = vmatprep.subr.mxu0 0.0
    %648 = vmatpush1.msra.mxu0 0.0
    %649 = vmatprep.subr.mxu0 0.0
    %650 = vmatpush1.msra.mxu0 0.0
    %651 = vmatprep.subr.mxu0 0.0
    %652 = vmatpush1.msra.mxu0 0.0
    %653 = vmatprep.subr.mxu0 0.0
    %654 = vmatpush1.msra.mxu0 0.0
    %655 = vmatprep.subr.mxu0 0.0
    %656 = vmatpush1.msra.mxu0 0.0
    %657 = vmatprep.mubr.f32.mxu0 0.0
    %658 = vmatmul.mubr.f32.gmra.mrb[0].mxu0 %v588
    %v659 = vpop.f32.mrb[0].mxu0
    %v660 = vadd.f32 %v586, %v659
    %v661 = vpop.f32.mrb[0].mxu0
    %662 = vmatprep.mubr.f32.mxu0 0.0
    %663 = vmatmul.mubr.f32.gmra.mrb[0].mxu0 %v591
    %v664 = vpop.f32.mrb[0].mxu0
    %v665 = vadd.f32 %v586, %v664
    %v666 = vpop.f32.mrb[0].mxu0
    %667 = vdwg.mxu0
    %vm668 = vcmask 7168
    %v669 = vsel %vm668, %v660, -inf
    %v670 = vsel %vm668, %v665, -inf
    %v671 = vmax.f32 %v669, %v670
    %v672 = vrot.slane %v671, 4
    %v673 = vmax.f32 %v671, %v672
    %v674 = vrot.slane %v673, 2
    %v675 = vmax.f32 %v673, %v674
    %v676 = vrot.slane %v675, 1
    %v677 = vmax.f32 %v675, %v676
    %v678 = vsub.f32 %v660, %v677
    %v679 = vsub.f32 %v665, %v677
    %v680 = vmul.f32 %v678, 1.442695
    %v681 = vpow.pop %v680
    %v682 = vmul.f32 %v679, 1.442695
    %v683 = vpow.pop %v682
    %v684 = vsel %vm668, %v681, 0.0
    %v685 = vsel %vm668, %v683, 0.0
    %v686 = vadd.f32 %v684, %v685
    %v687 = vrot.slane %v686, 4
    %v688 = vadd.f32 %v686, %v687
    %v689 = vrot.slane %v688, 2
    %v690 = vadd.f32 %v688, %v689
    %v691 = vrot.slane %v690, 1
    %v692 = vadd.f32 %v690, %v691
    %v693 = vrcp.pop %v692
    %v694 = vmul.f32 %v681, %v693
    %v695 = vmul.f32 %v683, %v693
    %697 = vset.pattern.permute.xlu0 0
    %698 = vperm.xlu0 %697, %v694
    %v699 = vpop.permute.xlu0 %698
    %702 = vset.pattern.permute.xlu0 0
    %703 = vperm.xlu0 %702, %v695
    %v704 = vpop.permute.xlu0 %703
    %v706 = vmul.f32 %v699, %v286
    %v707 = vmul.f32 %v704, %v287
    %v708 = vsel %vm487, %v706, 0.0
    %v709 = vsel %vm487, %v707, 0.0
    %v710 = vadd.f32 %v708, %v709
    %v711 = vrot.slane %v710, 4
    %v712 = vadd.f32 %v710, %v711
    %v713 = vrot.slane %v712, 2
    %v714 = vadd.f32 %v712, %v713
    %v715 = vrot.slane %v714, 1
    %v716 = vadd.f32 %v714, %v715
    %v717 = vpack.c.bf16 %v716, %v716
    %v719 = vsel %vm487, %v717, 0
    %721 = vmatprep.subr.bf16.mxu0 0
    %722 = vmatpush1.bf16.msra.mxu0 %v528
    %723 = vmatprep.subr.bf16.mxu0 0
    %724 = vmatpush1.bf16.msra.mxu0 %v529
    %725 = vmatprep.subr.bf16.mxu0 0
    %726 = vmatpush1.bf16.msra.mxu0 %v530
    %727 = vmatprep.subr.bf16.mxu0 0
    %728 = vmatpush1.bf16.msra.mxu0 %v531
    %729 = vmatprep.subr.bf16.mxu0 0
    %730 = vmatpush1.bf16.msra.mxu0 0
    %731 = vmatprep.subr.bf16.mxu0 0
    %732 = vmatpush1.bf16.msra.mxu0 0
    %733 = vmatprep.subr.bf16.mxu0 0
    %734 = vmatpush1.bf16.msra.mxu0 0
    %735 = vmatprep.subr.bf16.mxu0 0
    %736 = vmatpush1.bf16.msra.mxu0 0
    %737 = vmatprep.subr.bf16.mxu0 0
    %738 = vmatpush1.bf16.msra.mxu0 0
    %739 = vmatprep.subr.bf16.mxu0 0
    %740 = vmatpush1.bf16.msra.mxu0 0
    %741 = vmatprep.subr.bf16.mxu0 0
    %742 = vmatpush1.bf16.msra.mxu0 0
    %743 = vmatprep.subr.bf16.mxu0 0
    %744 = vmatpush1.bf16.msra.mxu0 0
    %745 = vmatprep.subr.bf16.mxu0 0
    %746 = vmatpush1.bf16.msra.mxu0 0
    %747 = vmatprep.subr.bf16.mxu0 0
    %748 = vmatpush1.bf16.msra.mxu0 0
    %749 = vmatprep.subr.bf16.mxu0 0
    %750 = vmatpush1.bf16.msra.mxu0 0
    %751 = vmatprep.subr.bf16.mxu0 0
    %752 = vmatpush1.bf16.msra.mxu0 0
    %753 = vmatprep.mubr.bf16.mxu0 0
    %754 = vmatmul.mubr.bf16.gmra.mrb[0].mxu0 %v719
    %v755 = vpop.f32.mrb[0].mxu0
    %v756 = vadd.f32 0.0, %v755
    %v757 = vpop.f32.mrb[0].mxu0
    %v758 = vpop.f32.mrb[0].mxu0
    %v759 = vpop.f32.mrb[0].mxu0
    %760 = vdwg.mxu0
    %v761 = vlaneseq
    %v762 = vshrl.u32 %v761, 7
    %v763 = vsub.s32 0, %v762
    %v764 = vrot.slane %v756, %v763
    %v765 = vadd.f32 %v575, %v764
    %v766 = vadd.f32 %v578, %v764
    %v767 = vmax.f32 %v765, 0.0
    %v768 = vmax.f32 %v766, 0.0
    %v770 = vsel %vm213, %v767, 0
    %v773 = vsel %vm213, %v768, 0
    %775 = vmatprep.subr.mxu0 0.0
    %776 = vmatpush1.msra.mxu0 %v81
    %777 = vmatprep.subr.mxu0 0.0
    %778 = vmatpush1.msra.mxu0 %v82
    %779 = vmatprep.subr.mxu0 0.0
    %780 = vmatpush1.msra.mxu0 0.0
    %781 = vmatprep.subr.mxu0 0.0
    %782 = vmatpush1.msra.mxu0 0.0
    %783 = vmatprep.subr.mxu0 0.0
    %784 = vmatpush1.msra.mxu0 0.0
    %785 = vmatprep.subr.mxu0 0.0
    %786 = vmatpush1.msra.mxu0 0.0
    %787 = vmatprep.subr.mxu0 0.0
    %788 = vmatpush1.msra.mxu0 0.0
    %789 = vmatprep.subr.mxu0 0.0
    %790 = vmatpush1.msra.mxu0 0.0
    %791 = vmatprep.subr.mxu0 0.0
    %792 = vmatpush1.msra.mxu0 0.0
    %793 = vmatprep.subr.mxu0 0.0
    %794 = vmatpush1.msra.mxu0 0.0
    %795 = vmatprep.subr.mxu0 0.0
    %796 = vmatpush1.msra.mxu0 0.0
    %797 = vmatprep.subr.mxu0 0.0
    %798 = vmatpush1.msra.mxu0 0.0
    %799 = vmatprep.subr.mxu0 0.0
    %800 = vmatpush1.msra.mxu0 0.0
    %801 = vmatprep.subr.mxu0 0.0
    %802 = vmatpush1.msra.mxu0 0.0
    %803 = vmatprep.subr.mxu0 0.0
    %804 = vmatpush1.msra.mxu0 0.0
    %805 = vmatprep.subr.mxu0 0.0
    %806 = vmatpush1.msra.mxu0 0.0
    %807 = vmatprep.subr.mxu0 0.0
    %808 = vmatpush1.msra.mxu0 0.0
    %809 = vmatprep.subr.mxu0 0.0
    %810 = vmatpush1.msra.mxu0 0.0
    %811 = vmatprep.subr.mxu0 0.0
    %812 = vmatpush1.msra.mxu0 0.0
    %813 = vmatprep.subr.mxu0 0.0
    %814 = vmatpush1.msra.mxu0 0.0
    %815 = vmatprep.subr.mxu0 0.0
    %816 = vmatpush1.msra.mxu0 0.0
    %817 = vmatprep.subr.mxu0 0.0
    %818 = vmatpush1.msra.mxu0 0.0
    %819 = vmatprep.subr.mxu0 0.0
    %820 = vmatpush1.msra.mxu0 0.0
    %821 = vmatprep.subr.mxu0 0.0
    %822 = vmatpush1.msra.mxu0 0.0
    %823 = vmatprep.subr.mxu0 0.0
    %824 = vmatpush1.msra.mxu0 0.0
    %825 = vmatprep.subr.mxu0 0.0
    %826 = vmatpush1.msra.mxu0 0.0
    %827 = vmatprep.subr.mxu0 0.0
    %828 = vmatpush1.msra.mxu0 0.0
    %829 = vmatprep.subr.mxu0 0.0
    %830 = vmatpush1.msra.mxu0 0.0
    %831 = vmatprep.subr.mxu0 0.0
    %832 = vmatpush1.msra.mxu0 0.0
    %833 = vmatprep.subr.mxu0 0.0
    %834 = vmatpush1.msra.mxu0 0.0
    %835 = vmatprep.subr.mxu0 0.0
    %836 = vmatpush1.msra.mxu0 0.0
    %837 = vmatprep.subr.mxu0 0.0
    %838 = vmatpush1.msra.mxu0 0.0
    %839 = vmatprep.mubr.f32.mxu0 0.0
    %840 = vmatmul.mubr.f32.gmra.mrb[0].mxu0 %v770
    %v841 = vpop.f32.mrb[0].mxu0
    %v842 = vadd.f32 %v586, %v841
    %v843 = vpop.f32.mrb[0].mxu0
    %844 = vmatprep.mubr.f32.mxu0 0.0
    %845 = vmatmul.mubr.f32.gmra.mrb[0].mxu0 %v773
    %v846 = vpop.f32.mrb[0].mxu0
    %v847 = vadd.f32 %v586, %v846
    %v848 = vpop.f32.mrb[0].mxu0
    %849 = vdwg.mxu0
    %v850 = vsel %vm668, %v842, -inf
    %v851 = vsel %vm668, %v847, -inf
    %v852 = vmax.f32 %v850, %v851
    %v853 = vrot.slane %v852, 4
    %v854 = vmax.f32 %v852, %v853
    %v855 = vrot.slane %v854, 2
    %v856 = vmax.f32 %v854, %v855
    %v857 = vrot.slane %v856, 1
    %v858 = vmax.f32 %v856, %v857
    %v859 = vsub.f32 %v842, %v858
    %v860 = vsub.f32 %v847, %v858
    %v861 = vmul.f32 %v859, 1.442695
    %v862 = vpow.pop %v861
    %v863 = vmul.f32 %v860, 1.442695
    %v864 = vpow.pop %v863
    %v865 = vsel %vm668, %v862, 0.0
    %v866 = vsel %vm668, %v864, 0.0
    %v867 = vadd.f32 %v865, %v866
    %v868 = vrot.slane %v867, 4
    %v869 = vadd.f32 %v867, %v868
    %v870 = vrot.slane %v869, 2
    %v871 = vadd.f32 %v869, %v870
    %v872 = vrot.slane %v871, 1
    %v873 = vadd.f32 %v871, %v872
    %v874 = vrcp.pop %v873
    %v875 = vmul.f32 %v862, %v874
    %v876 = vmul.f32 %v864, %v874
    %878 = vset.pattern.permute.xlu0 0
    %879 = vperm.xlu0 %878, %v875
    %v880 = vpop.permute.xlu0 %879
    %883 = vset.pattern.permute.xlu0 0
    %884 = vperm.xlu0 %883, %v876
    %v885 = vpop.permute.xlu0 %884
    %v887 = vmul.f32 %v880, %v286
    %v888 = vmul.f32 %v885, %v287
    %v889 = vsel %vm487, %v887, 0.0
    %v890 = vsel %vm487, %v888, 0.0
    %v891 = vadd.f32 %v889, %v890
    %v892 = vrot.slane %v891, 4
    %v893 = vadd.f32 %v891, %v892
    %v894 = vrot.slane %v893, 2
    %v895 = vadd.f32 %v893, %v894
    %v896 = vrot.slane %v895, 1
    %v897 = vadd.f32 %v895, %v896
    %v898 = vadd.f32 %v897, %v716
    %v899 = vpack.c.bf16 %v527, %v526
    %v900 = vlaneseq
    %v901 = vshrl.u32 %v900, 7
    %v902 = vsub.s32 5, %v901
    %v903 = vrot.slane %v85, %v902
    %908 = vrot.lane.b32.xlu0 %v528, 112
    %v909 = vpop.permute.xlu0 %908
    %910 = vrot.lane.b32.xlu0 %v529, 112
    %v911 = vpop.permute.xlu0 %910
    %912 = vrot.lane.b32.xlu0 %v530, 112
    %v913 = vpop.permute.xlu0 %912
    %914 = vrot.lane.b32.xlu0 %v531, 112
    %v915 = vpop.permute.xlu0 %914
    %v921 = vsel %vm487, %v899, 0
    %923 = vmatprep.subr.bf16.mxu0 0
    %924 = vmatpush1.bf16.msra.mxu0 %v909
    %925 = vmatprep.subr.bf16.mxu0 0
    %926 = vmatpush1.bf16.msra.mxu0 %v911
    %927 = vmatprep.subr.bf16.mxu0 0
    %928 = vmatpush1.bf16.msra.mxu0 %v913
    %929 = vmatprep.subr.bf16.mxu0 0
    %930 = vmatpush1.bf16.msra.mxu0 %v915
    %931 = vmatprep.subr.bf16.mxu0 0
    %932 = vmatpush1.bf16.msra.mxu0 0
    %933 = vmatprep.subr.bf16.mxu0 0
    %934 = vmatpush1.bf16.msra.mxu0 0
    %935 = vmatprep.subr.bf16.mxu0 0
    %936 = vmatpush1.bf16.msra.mxu0 0
    %937 = vmatprep.subr.bf16.mxu0 0
    %938 = vmatpush1.bf16.msra.mxu0 0
    %939 = vmatprep.subr.bf16.mxu0 0
    %940 = vmatpush1.bf16.msra.mxu0 0
    %941 = vmatprep.subr.bf16.mxu0 0
    %942 = vmatpush1.bf16.msra.mxu0 0
    %943 = vmatprep.subr.bf16.mxu0 0
    %944 = vmatpush1.bf16.msra.mxu0 0
    %945 = vmatprep.subr.bf16.mxu0 0
    %946 = vmatpush1.bf16.msra.mxu0 0
    %947 = vmatprep.subr.bf16.mxu0 0
    %948 = vmatpush1.bf16.msra.mxu0 0
    %949 = vmatprep.subr.bf16.mxu0 0
    %950 = vmatpush1.bf16.msra.mxu0 0
    %951 = vmatprep.subr.bf16.mxu0 0
    %952 = vmatpush1.bf16.msra.mxu0 0
    %953 = vmatprep.subr.bf16.mxu0 0
    %954 = vmatpush1.bf16.msra.mxu0 0
    %955 = vmatprep.mubr.bf16.mxu0 0
    %956 = vmatmul.mubr.bf16.gmra.mrb[0].mxu0 %v921
    %v957 = vpop.f32.mrb[0].mxu0
    %v958 = vadd.f32 %v903, %v957
    %v959 = vpop.f32.mrb[0].mxu0
    %v960 = vpop.f32.mrb[0].mxu0
    %v961 = vadd.f32 %v903, %v960
    %v962 = vpop.f32.mrb[0].mxu0
    %963 = vdwg.mxu0
    %v964 = vmax.f32 %v958, 0.0
    %v965 = vmax.f32 %v961, 0.0
    %967 = vrot.lane.b32.xlu0 %v586, 127
    %v968 = vpop.permute.xlu0 %967
    %v971 = vsel %vm213, %v964, 0
    %v974 = vsel %vm213, %v965, 0
    %976 = vmatprep.subr.mxu0 0.0
    %977 = vmatpush1.msra.mxu0 %v83
    %978 = vmatprep.subr.mxu0 0.0
    %979 = vmatpush1.msra.mxu0 %v84
    %980 = vmatprep.subr.mxu0 0.0
    %981 = vmatpush1.msra.mxu0 0.0
    %982 = vmatprep.subr.mxu0 0.0
    %983 = vmatpush1.msra.mxu0 0.0
    %984 = vmatprep.subr.mxu0 0.0
    %985 = vmatpush1.msra.mxu0 0.0
    %986 = vmatprep.subr.mxu0 0.0
    %987 = vmatpush1.msra.mxu0 0.0
    %988 = vmatprep.subr.mxu0 0.0
    %989 = vmatpush1.msra.mxu0 0.0
    %990 = vmatprep.subr.mxu0 0.0
    %991 = vmatpush1.msra.mxu0 0.0
    %992 = vmatprep.subr.mxu0 0.0
    %993 = vmatpush1.msra.mxu0 0.0
    %994 = vmatprep.subr.mxu0 0.0
    %995 = vmatpush1.msra.mxu0 0.0
    %996 = vmatprep.subr.mxu0 0.0
    %997 = vmatpush1.msra.mxu0 0.0
    %998 = vmatprep.subr.mxu0 0.0
    %999 = vmatpush1.msra.mxu0 0.0
    %1000 = vmatprep.subr.mxu0 0.0
    %1001 = vmatpush1.msra.mxu0 0.0
    %1002 = vmatprep.subr.mxu0 0.0
    %1003 = vmatpush1.msra.mxu0 0.0
    %1004 = vmatprep.subr.mxu0 0.0
    %1005 = vmatpush1.msra.mxu0 0.0
    %1006 = vmatprep.subr.mxu0 0.0
    %1007 = vmatpush1.msra.mxu0 0.0
    %1008 = vmatprep.subr.mxu0 0.0
    %1009 = vmatpush1.msra.mxu0 0.0
    %1010 = vmatprep.subr.mxu0 0.0
    %1011 = vmatpush1.msra.mxu0 0.0
    %1012 = vmatprep.subr.mxu0 0.0
    %1013 = vmatpush1.msra.mxu0 0.0
    %1014 = vmatprep.subr.mxu0 0.0
    %1015 = vmatpush1.msra.mxu0 0.0
    %1016 = vmatprep.subr.mxu0 0.0
    %1017 = vmatpush1.msra.mxu0 0.0
    %1018 = vmatprep.subr.mxu0 0.0
    %1019 = vmatpush1.msra.mxu0 0.0
    %1020 = vmatprep.subr.mxu0 0.0
    %1021 = vmatpush1.msra.mxu0 0.0
    %1022 = vmatprep.subr.mxu0 0.0
    %1023 = vmatpush1.msra.mxu0 0.0
    %1024 = vmatprep.subr.mxu0 0.0
    %1025 = vmatpush1.msra.mxu0 0.0
    %1026 = vmatprep.subr.mxu0 0.0
    %1027 = vmatpush1.msra.mxu0 0.0
    %1028 = vmatprep.subr.mxu0 0.0
    %1029 = vmatpush1.msra.mxu0 0.0
    %1030 = vmatprep.subr.mxu0 0.0
    %1031 = vmatpush1.msra.mxu0 0.0
    %1032 = vmatprep.subr.mxu0 0.0
    %1033 = vmatpush1.msra.mxu0 0.0
    %1034 = vmatprep.subr.mxu0 0.0
    %1035 = vmatpush1.msra.mxu0 0.0
    %1036 = vmatprep.subr.mxu0 0.0
    %1037 = vmatpush1.msra.mxu0 0.0
    %1038 = vmatprep.subr.mxu0 0.0
    %1039 = vmatpush1.msra.mxu0 0.0
    %1040 = vmatprep.mubr.f32.mxu0 0.0
    %1041 = vmatmul.mubr.f32.gmra.mrb[0].mxu0 %v971
    %v1042 = vpop.f32.mrb[0].mxu0
    %v1043 = vadd.f32 %v968, %v1042
    %v1044 = vpop.f32.mrb[0].mxu0
    %1045 = vmatprep.mubr.f32.mxu0 0.0
    %1046 = vmatmul.mubr.f32.gmra.mrb[0].mxu0 %v974
    %v1047 = vpop.f32.mrb[0].mxu0
    %v1048 = vadd.f32 %v968, %v1047
    %v1049 = vpop.f32.mrb[0].mxu0
    %1050 = vdwg.mxu0
    %v1051 = vsel %vm668, %v1043, -inf
    %vm1052 = vcmask 3072
    %v1053 = vsel %vm1052, %v1048, -inf
    %v1054 = vmax.f32 %v1051, %v1053
    %v1055 = vrot.slane %v1054, 4
    %v1056 = vmax.f32 %v1054, %v1055
    %v1057 = vrot.slane %v1056, 2
    %v1058 = vmax.f32 %v1056, %v1057
    %v1059 = vrot.slane %v1058, 1
    %v1060 = vmax.f32 %v1058, %v1059
    %v1061 = vsub.f32 %v1043, %v1060
    %v1062 = vsub.f32 %v1048, %v1060
    %v1063 = vmul.f32 %v1061, 1.442695
    %v1064 = vpow.pop %v1063
    %v1065 = vmul.f32 %v1062, 1.442695
    %v1066 = vpow.pop %v1065
    %v1067 = vsel %vm668, %v1064, 0.0
    %v1068 = vsel %vm1052, %v1066, 0.0
    %v1069 = vadd.f32 %v1067, %v1068
    %v1070 = vrot.slane %v1069, 4
    %v1071 = vadd.f32 %v1069, %v1070
    %v1072 = vrot.slane %v1071, 2
    %v1073 = vadd.f32 %v1071, %v1072
    %v1074 = vrot.slane %v1073, 1
    %v1075 = vadd.f32 %v1073, %v1074
    %v1076 = vrcp.pop %v1075
    %v1077 = vmul.f32 %v1064, %v1076
    %v1078 = vmul.f32 %v1066, %v1076
    %1080 = vset.pattern.permute.xlu0 0
    %1081 = vperm.xlu0 %1080, %v1077
    %v1082 = vpop.permute.xlu0 %1081
    %1085 = vset.pattern.permute.xlu0 0
    %1086 = vperm.xlu0 %1085, %v1078
    %v1087 = vpop.permute.xlu0 %1086
    %v1089 = vmul.f32 %v1082, %v526
    %v1090 = vmul.f32 %v1087, %v527
    %v1091 = vsel %vm487, %v1089, 0.0
    %v1092 = vsel %vm491, %v1090, 0.0
    %v1093 = vadd.f32 %v1091, %v1092
    %v1094 = vrot.slane %v1093, 4
    %v1095 = vadd.f32 %v1093, %v1094
    %v1096 = vrot.slane %v1095, 2
    %v1097 = vadd.f32 %v1095, %v1096
    %v1098 = vrot.slane %v1097, 1
    %v1099 = vadd.f32 %v1097, %v1098
    %v1100 = vpack.c.bf16 %v1099, %v1099
    %v1102 = vsel %vm487, %v1100, 0
    %1104 = vmatprep.subr.bf16.mxu0 0
    %1105 = vmatpush1.bf16.msra.mxu0 %v909
    %1106 = vmatprep.subr.bf16.mxu0 0
    %1107 = vmatpush1.bf16.msra.mxu0 %v911
    %1108 = vmatprep.subr.bf16.mxu0 0
    %1109 = vmatpush1.bf16.msra.mxu0 %v913
    %1110 = vmatprep.subr.bf16.mxu0 0
    %1111 = vmatpush1.bf16.msra.mxu0 %v915
    %1112 = vmatprep.subr.bf16.mxu0 0
    %1113 = vmatpush1.bf16.msra.mxu0 0
    %1114 = vmatprep.subr.bf16.mxu0 0
    %1115 = vmatpush1.bf16.msra.mxu0 0
    %1116 = vmatprep.subr.bf16.mxu0 0
    %1117 = vmatpush1.bf16.msra.mxu0 0
    %1118 = vmatprep.subr.bf16.mxu0 0
    %1119 = vmatpush1.bf16.msra.mxu0 0
    %1120 = vmatprep.subr.bf16.mxu0 0
    %1121 = vmatpush1.bf16.msra.mxu0 0
    %1122 = vmatprep.subr.bf16.mxu0 0
    %1123 = vmatpush1.bf16.msra.mxu0 0
    %1124 = vmatprep.subr.bf16.mxu0 0
    %1125 = vmatpush1.bf16.msra.mxu0 0
    %1126 = vmatprep.subr.bf16.mxu0 0
    %1127 = vmatpush1.bf16.msra.mxu0 0
    %1128 = vmatprep.subr.bf16.mxu0 0
    %1129 = vmatpush1.bf16.msra.mxu0 0
    %1130 = vmatprep.subr.bf16.mxu0 0
    %1131 = vmatpush1.bf16.msra.mxu0 0
    %1132 = vmatprep.subr.bf16.mxu0 0
    %1133 = vmatpush1.bf16.msra.mxu0 0
    %1134 = vmatprep.subr.bf16.mxu0 0
    %1135 = vmatpush1.bf16.msra.mxu0 0
    %1136 = vmatprep.mubr.bf16.mxu0 0
    %1137 = vmatmul.mubr.bf16.gmra.mrb[0].mxu0 %v1102
    %v1138 = vpop.f32.mrb[0].mxu0
    %v1139 = vadd.f32 0.0, %v1138
    %v1140 = vpop.f32.mrb[0].mxu0
    %v1141 = vpop.f32.mrb[0].mxu0
    %v1142 = vpop.f32.mrb[0].mxu0
    %1143 = vdwg.mxu0
    %v1144 = vlaneseq
    %v1145 = vshrl.u32 %v1144, 7
    %v1146 = vsub.s32 0, %v1145
    %v1147 = vrot.slane %v1139, %v1146
    %v1148 = vadd.f32 %v958, %v1147
    %v1149 = vadd.f32 %v961, %v1147
    %v1150 = vmax.f32 %v1148, 0.0
    %v1151 = vmax.f32 %v1149, 0.0
    %v1153 = vsel %vm213, %v1150, 0
    %v1156 = vsel %vm213, %v1151, 0
    %1158 = vmatprep.subr.mxu0 0.0
    %1159 = vmatpush1.msra.mxu0 %v83
    %1160 = vmatprep.subr.mxu0 0.0
    %1161 = vmatpush1.msra.mxu0 %v84
    %1162 = vmatprep.subr.mxu0 0.0
    %1163 = vmatpush1.msra.mxu0 0.0
    %1164 = vmatprep.subr.mxu0 0.0
    %1165 = vmatpush1.msra.mxu0 0.0
    %1166 = vmatprep.subr.mxu0 0.0
    %1167 = vmatpush1.msra.mxu0 0.0
    %1168 = vmatprep.subr.mxu0 0.0
    %1169 = vmatpush1.msra.mxu0 0.0
    %1170 = vmatprep.subr.mxu0 0.0
    %1171 = vmatpush1.msra.mxu0 0.0
    %1172 = vmatprep.subr.mxu0 0.0
    %1173 = vmatpush1.msra.mxu0 0.0
    %1174 = vmatprep.subr.mxu0 0.0
    %1175 = vmatpush1.msra.mxu0 0.0
    %1176 = vmatprep.subr.mxu0 0.0
    %1177 = vmatpush1.msra.mxu0 0.0
    %1178 = vmatprep.subr.mxu0 0.0
    %1179 = vmatpush1.msra.mxu0 0.0
    %1180 = vmatprep.subr.mxu0 0.0
    %1181 = vmatpush1.msra.mxu0 0.0
    %1182 = vmatprep.subr.mxu0 0.0
    %1183 = vmatpush1.msra.mxu0 0.0
    %1184 = vmatprep.subr.mxu0 0.0
    %1185 = vmatpush1.msra.mxu0 0.0
    %1186 = vmatprep.subr.mxu0 0.0
    %1187 = vmatpush1.msra.mxu0 0.0
    %1188 = vmatprep.subr.mxu0 0.0
    %1189 = vmatpush1.msra.mxu0 0.0
    %1190 = vmatprep.subr.mxu0 0.0
    %1191 = vmatpush1.msra.mxu0 0.0
    %1192 = vmatprep.subr.mxu0 0.0
    %1193 = vmatpush1.msra.mxu0 0.0
    %1194 = vmatprep.subr.mxu0 0.0
    %1195 = vmatpush1.msra.mxu0 0.0
    %1196 = vmatprep.subr.mxu0 0.0
    %1197 = vmatpush1.msra.mxu0 0.0
    %1198 = vmatprep.subr.mxu0 0.0
    %1199 = vmatpush1.msra.mxu0 0.0
    %1200 = vmatprep.subr.mxu0 0.0
    %1201 = vmatpush1.msra.mxu0 0.0
    %1202 = vmatprep.subr.mxu0 0.0
    %1203 = vmatpush1.msra.mxu0 0.0
    %1204 = vmatprep.subr.mxu0 0.0
    %1205 = vmatpush1.msra.mxu0 0.0
    %1206 = vmatprep.subr.mxu0 0.0
    %1207 = vmatpush1.msra.mxu0 0.0
    %1208 = vmatprep.subr.mxu0 0.0
    %1209 = vmatpush1.msra.mxu0 0.0
    %1210 = vmatprep.subr.mxu0 0.0
    %1211 = vmatpush1.msra.mxu0 0.0
    %1212 = vmatprep.subr.mxu0 0.0
    %1213 = vmatpush1.msra.mxu0 0.0
    %1214 = vmatprep.subr.mxu0 0.0
    %1215 = vmatpush1.msra.mxu0 0.0
    %1216 = vmatprep.subr.mxu0 0.0
    %1217 = vmatpush1.msra.mxu0 0.0
    %1218 = vmatprep.subr.mxu0 0.0
    %1219 = vmatpush1.msra.mxu0 0.0
    %1220 = vmatprep.subr.mxu0 0.0
    %1221 = vmatpush1.msra.mxu0 0.0
    %1222 = vmatprep.mubr.f32.mxu0 0.0
    %1223 = vmatmul.mubr.f32.gmra.mrb[0].mxu0 %v1153
    %v1224 = vpop.f32.mrb[0].mxu0
    %v1225 = vadd.f32 %v968, %v1224
    %v1226 = vpop.f32.mrb[0].mxu0
    %1227 = vmatprep.mubr.f32.mxu0 0.0
    %1228 = vmatmul.mubr.f32.gmra.mrb[0].mxu0 %v1156
    %v1229 = vpop.f32.mrb[0].mxu0
    %v1230 = vadd.f32 %v968, %v1229
    %v1231 = vpop.f32.mrb[0].mxu0
    %1232 = vdwg.mxu0
    %v1233 = vsel %vm668, %v1225, -inf
    %v1234 = vsel %vm1052, %v1230, -inf
    %v1235 = vmax.f32 %v1233, %v1234
    %v1236 = vrot.slane %v1235, 4
    %v1237 = vmax.f32 %v1235, %v1236
    %v1238 = vrot.slane %v1237, 2
    %v1239 = vmax.f32 %v1237, %v1238
    %v1240 = vrot.slane %v1239, 1
    %v1241 = vmax.f32 %v1239, %v1240
    %v1242 = vsub.f32 %v1225, %v1241
    %v1243 = vsub.f32 %v1230, %v1241
    %v1244 = vmul.f32 %v1242, 1.442695
    %v1245 = vpow.pop %v1244
    %v1246 = vmul.f32 %v1243, 1.442695
    %v1247 = vpow.pop %v1246
    %v1248 = vsel %vm668, %v1245, 0.0
    %v1249 = vsel %vm1052, %v1247, 0.0
    %v1250 = vadd.f32 %v1248, %v1249
    %v1251 = vrot.slane %v1250, 4
    %v1252 = vadd.f32 %v1250, %v1251
    %v1253 = vrot.slane %v1252, 2
    %v1254 = vadd.f32 %v1252, %v1253
    %v1255 = vrot.slane %v1254, 1
    %v1256 = vadd.f32 %v1254, %v1255
    %v1257 = vrcp.pop %v1256
    %v1258 = vmul.f32 %v1245, %v1257
    %v1259 = vmul.f32 %v1247, %v1257
    %1261 = vset.pattern.permute.xlu0 0
    %1262 = vperm.xlu0 %1261, %v1258
    %v1263 = vpop.permute.xlu0 %1262
    %1266 = vset.pattern.permute.xlu0 0
    %1267 = vperm.xlu0 %1266, %v1259
    %v1268 = vpop.permute.xlu0 %1267
    %v1270 = vmul.f32 %v1263, %v526
    %v1271 = vmul.f32 %v1268, %v527
    %v1272 = vsel %vm487, %v1270, 0.0
    %v1273 = vsel %vm491, %v1271, 0.0
    %v1274 = vadd.f32 %v1272, %v1273
    %v1275 = vrot.slane %v1274, 4
    %v1276 = vadd.f32 %v1274, %v1275
    %v1277 = vrot.slane %v1276, 2
    %v1278 = vadd.f32 %v1276, %v1277
    %v1279 = vrot.slane %v1278, 1
    %v1280 = vadd.f32 %v1278, %v1279
    %v1281 = vadd.f32 %v1280, %v1099
    %v1282 = vmul.f32 %v898, %v898
    %v1283 = vsel %vm487, %v1282, 0.0
    %1284 = vadd.xlane.f32.xlu0 %v1283
    %v1285 = vpop.xlane.xlu0 %1284
    %v1286 = vmax.f32 %v1285, 1e-24
    %v1287 = vrsqrt.pop %v1286
    %v1288 = vmul.f32 %v898, %v1287
    %1297 = vrot.lane.b32.xlu0 %v73, 96
    %v1298 = vpop.permute.xlu0 %1297
    %1299 = vrot.lane.b32.xlu0 %v74, 96
    %v1300 = vpop.permute.xlu0 %1299
    %1301 = vrot.lane.b32.xlu0 %v75, 96
    %v1302 = vpop.permute.xlu0 %1301
    %1303 = vrot.lane.b32.xlu0 %v76, 96
    %v1304 = vpop.permute.xlu0 %1303
    %1305 = vrot.lane.b32.xlu0 %v77, 96
    %v1306 = vpop.permute.xlu0 %1305
    %1307 = vrot.lane.b32.xlu0 %v78, 96
    %v1308 = vpop.permute.xlu0 %1307
    %1309 = vrot.lane.b32.xlu0 %v79, 96
    %v1310 = vpop.permute.xlu0 %1309
    %1311 = vrot.lane.b32.xlu0 %v80, 96
    %v1312 = vpop.permute.xlu0 %1311
    %v1322 = vrot.slane %v85, 6
    %v1325 = vsel %vm487, %v1288, 0
    %1327 = vmatprep.subr.mxu0 0.0
    %1328 = vmatpush1.msra.mxu0 %v1298
    %1329 = vmatprep.subr.mxu0 0.0
    %1330 = vmatpush1.msra.mxu0 %v1300
    %1331 = vmatprep.subr.mxu0 0.0
    %1332 = vmatpush1.msra.mxu0 %v1302
    %1333 = vmatprep.subr.mxu0 0.0
    %1334 = vmatpush1.msra.mxu0 %v1304
    %1335 = vmatprep.subr.mxu0 0.0
    %1336 = vmatpush1.msra.mxu0 %v1306
    %1337 = vmatprep.subr.mxu0 0.0
    %1338 = vmatpush1.msra.mxu0 %v1308
    %1339 = vmatprep.subr.mxu0 0.0
    %1340 = vmatpush1.msra.mxu0 %v1310
    %1341 = vmatprep.subr.mxu0 0.0
    %1342 = vmatpush1.msra.mxu0 %v1312
    %1343 = vmatprep.subr.mxu0 0.0
    %1344 = vmatpush1.msra.mxu0 0.0
    %1345 = vmatprep.subr.mxu0 0.0
    %1346 = vmatpush1.msra.mxu0 0.0
    %1347 = vmatprep.subr.mxu0 0.0
    %1348 = vmatpush1.msra.mxu0 0.0
    %1349 = vmatprep.subr.mxu0 0.0
    %1350 = vmatpush1.msra.mxu0 0.0
    %1351 = vmatprep.subr.mxu0 0.0
    %1352 = vmatpush1.msra.mxu0 0.0
    %1353 = vmatprep.subr.mxu0 0.0
    %1354 = vmatpush1.msra.mxu0 0.0
    %1355 = vmatprep.subr.mxu0 0.0
    %1356 = vmatpush1.msra.mxu0 0.0
    %1357 = vmatprep.subr.mxu0 0.0
    %1358 = vmatpush1.msra.mxu0 0.0
    %1359 = vmatprep.subr.mxu0 0.0
    %1360 = vmatpush1.msra.mxu0 0.0
    %1361 = vmatprep.subr.mxu0 0.0
    %1362 = vmatpush1.msra.mxu0 0.0
    %1363 = vmatprep.subr.mxu0 0.0
    %1364 = vmatpush1.msra.mxu0 0.0
    %1365 = vmatprep.subr.mxu0 0.0
    %1366 = vmatpush1.msra.mxu0 0.0
    %1367 = vmatprep.subr.mxu0 0.0
    %1368 = vmatpush1.msra.mxu0 0.0
    %1369 = vmatprep.subr.mxu0 0.0
    %1370 = vmatpush1.msra.mxu0 0.0
    %1371 = vmatprep.subr.mxu0 0.0
    %1372 = vmatpush1.msra.mxu0 0.0
    %1373 = vmatprep.subr.mxu0 0.0
    %1374 = vmatpush1.msra.mxu0 0.0
    %1375 = vmatprep.subr.mxu0 0.0
    %1376 = vmatpush1.msra.mxu0 0.0
    %1377 = vmatprep.subr.mxu0 0.0
    %1378 = vmatpush1.msra.mxu0 0.0
    %1379 = vmatprep.subr.mxu0 0.0
    %1380 = vmatpush1.msra.mxu0 0.0
    %1381 = vmatprep.subr.mxu0 0.0
    %1382 = vmatpush1.msra.mxu0 0.0
    %1383 = vmatprep.subr.mxu0 0.0
    %1384 = vmatpush1.msra.mxu0 0.0
    %1385 = vmatprep.subr.mxu0 0.0
    %1386 = vmatpush1.msra.mxu0 0.0
    %1387 = vmatprep.subr.mxu0 0.0
    %1388 = vmatpush1.msra.mxu0 0.0
    %1389 = vmatprep.subr.mxu0 0.0
    %1390 = vmatpush1.msra.mxu0 0.0
    %1391 = vmatprep.mubr.f32.mxu0 0.0
    %1392 = vmatmul.mubr.f32.gmra.mrb[0].mxu0 %v1325
    %v1393 = vpop.f32.mrb[0].mxu0
    %v1394 = vadd.f32 %v1322, %v1393
    %v1395 = vpop.f32.mrb[0].mxu0
    %1396 = vdwg.mxu0
    %v1397 = vmax.f32 %v1394, 0.0
    %v1398 = vmul.f32 %v1281, %v1281
    %v1399 = vsel %vm487, %v1398, 0.0
    %1400 = vadd.xlane.f32.xlu0 %v1399
    %v1401 = vpop.xlane.xlu0 %1400
    %v1402 = vmax.f32 %v1401, 1e-24
    %v1403 = vrsqrt.pop %v1402
    %v1404 = vmul.f32 %v1281, %v1403
    %1405 = vrot.lane.b32.xlu0 %v73, 80
    %v1406 = vpop.permute.xlu0 %1405
    %1407 = vrot.lane.b32.xlu0 %v74, 80
    %v1408 = vpop.permute.xlu0 %1407
    %1409 = vrot.lane.b32.xlu0 %v75, 80
    %v1410 = vpop.permute.xlu0 %1409
    %1411 = vrot.lane.b32.xlu0 %v76, 80
    %v1412 = vpop.permute.xlu0 %1411
    %1413 = vrot.lane.b32.xlu0 %v77, 80
    %v1414 = vpop.permute.xlu0 %1413
    %1415 = vrot.lane.b32.xlu0 %v78, 80
    %v1416 = vpop.permute.xlu0 %1415
    %1417 = vrot.lane.b32.xlu0 %v79, 80
    %v1418 = vpop.permute.xlu0 %1417
    %1419 = vrot.lane.b32.xlu0 %v80, 80
    %v1420 = vpop.permute.xlu0 %1419
    %v1429 = vrot.slane %v85, 7
    %v1432 = vsel %vm487, %v1404, 0
    %1434 = vmatprep.subr.mxu0 0.0
    %1435 = vmatpush1.msra.mxu0 %v1406
    %1436 = vmatprep.subr.mxu0 0.0
    %1437 = vmatpush1.msra.mxu0 %v1408
    %1438 = vmatprep.subr.mxu0 0.0
    %1439 = vmatpush1.msra.mxu0 %v1410
    %1440 = vmatprep.subr.mxu0 0.0
    %1441 = vmatpush1.msra.mxu0 %v1412
    %1442 = vmatprep.subr.mxu0 0.0
    %1443 = vmatpush1.msra.mxu0 %v1414
    %1444 = vmatprep.subr.mxu0 0.0
    %1445 = vmatpush1.msra.mxu0 %v1416
    %1446 = vmatprep.subr.mxu0 0.0
    %1447 = vmatpush1.msra.mxu0 %v1418
    %1448 = vmatprep.subr.mxu0 0.0
    %1449 = vmatpush1.msra.mxu0 %v1420
    %1450 = vmatprep.subr.mxu0 0.0
    %1451 = vmatpush1.msra.mxu0 0.0
    %1452 = vmatprep.subr.mxu0 0.0
    %1453 = vmatpush1.msra.mxu0 0.0
    %1454 = vmatprep.subr.mxu0 0.0
    %1455 = vmatpush1.msra.mxu0 0.0
    %1456 = vmatprep.subr.mxu0 0.0
    %1457 = vmatpush1.msra.mxu0 0.0
    %1458 = vmatprep.subr.mxu0 0.0
    %1459 = vmatpush1.msra.mxu0 0.0
    %1460 = vmatprep.subr.mxu0 0.0
    %1461 = vmatpush1.msra.mxu0 0.0
    %1462 = vmatprep.subr.mxu0 0.0
    %1463 = vmatpush1.msra.mxu0 0.0
    %1464 = vmatprep.subr.mxu0 0.0
    %1465 = vmatpush1.msra.mxu0 0.0
    %1466 = vmatprep.subr.mxu0 0.0
    %1467 = vmatpush1.msra.mxu0 0.0
    %1468 = vmatprep.subr.mxu0 0.0
    %1469 = vmatpush1.msra.mxu0 0.0
    %1470 = vmatprep.subr.mxu0 0.0
    %1471 = vmatpush1.msra.mxu0 0.0
    %1472 = vmatprep.subr.mxu0 0.0
    %1473 = vmatpush1.msra.mxu0 0.0
    %1474 = vmatprep.subr.mxu0 0.0
    %1475 = vmatpush1.msra.mxu0 0.0
    %1476 = vmatprep.subr.mxu0 0.0
    %1477 = vmatpush1.msra.mxu0 0.0
    %1478 = vmatprep.subr.mxu0 0.0
    %1479 = vmatpush1.msra.mxu0 0.0
    %1480 = vmatprep.subr.mxu0 0.0
    %1481 = vmatpush1.msra.mxu0 0.0
    %1482 = vmatprep.subr.mxu0 0.0
    %1483 = vmatpush1.msra.mxu0 0.0
    %1484 = vmatprep.subr.mxu0 0.0
    %1485 = vmatpush1.msra.mxu0 0.0
    %1486 = vmatprep.subr.mxu0 0.0
    %1487 = vmatpush1.msra.mxu0 0.0
    %1488 = vmatprep.subr.mxu0 0.0
    %1489 = vmatpush1.msra.mxu0 0.0
    %1490 = vmatprep.subr.mxu0 0.0
    %1491 = vmatpush1.msra.mxu0 0.0
    %1492 = vmatprep.subr.mxu0 0.0
    %1493 = vmatpush1.msra.mxu0 0.0
    %1494 = vmatprep.subr.mxu0 0.0
    %1495 = vmatpush1.msra.mxu0 0.0
    %1496 = vmatprep.subr.mxu0 0.0
    %1497 = vmatpush1.msra.mxu0 0.0
    %1498 = vmatprep.mubr.f32.mxu0 0.0
    %1499 = vmatmul.mubr.f32.gmra.mrb[0].mxu0 %v1432
    %v1500 = vpop.f32.mrb[0].mxu0
    %v1501 = vadd.f32 %v1429, %v1500
    %v1502 = vpop.f32.mrb[0].mxu0
    %1503 = vdwg.mxu0
    %v1504 = vmax.f32 %v1501, 0.0
    %vm1505 = vcmask 122880
    %v1506 = vsel %vm1505, %v1397, 0.0
    %1507 = vadd.xlane.f32.xlu0 %v1506
    %v1508 = vpop.xlane.xlu0 %1507
    %v1509 = vrcp.pop 16.0
    %v1510 = vmul.f32 %v1508, %v1509
    %v1511 = vsub.f32 %v1397, %v1510
    %v1512 = vmul.f32 %v1511, %v1511
    %v1513 = vsel %vm1505, %v1512, 0.0
    %1514 = vadd.xlane.f32.xlu0 %v1513
    %v1515 = vpop.xlane.xlu0 %1514
    %v1516 = vmul.f32 %v1515, %v1509
    %v1517 = vadd.f32 %v1516, 1e-05
    %v1518 = vrsqrt.pop %v1517
    %v1519 = vmul.f32 %v1511, %v1518
    %v1520 = vmul.f32 %v1519, %v86
    %v1522 = vrot.slane %v86, 1
    %v1524 = vadd.f32 %v1520, %v1522
    %v1525 = vsel %vm1505, %v1504, 0.0
    %1526 = vadd.xlane.f32.xlu0 %v1525
    %v1527 = vpop.xlane.xlu0 %1526
    %v1528 = vmul.f32 %v1527, %v1509
    %v1529 = vsub.f32 %v1504, %v1528
    %v1530 = vmul.f32 %v1529, %v1529
    %v1531 = vsel %vm1505, %v1530, 0.0
    %1532 = vadd.xlane.f32.xlu0 %v1531
    %v1533 = vpop.xlane.xlu0 %1532
    %v1534 = vmul.f32 %v1533, %v1509
    %v1535 = vadd.f32 %v1534, 1e-05
    %v1536 = vrsqrt.pop %v1535
    %v1537 = vmul.f32 %v1529, %v1536
    %v1538 = vrot.slane %v86, 2
    %v1540 = vmul.f32 %v1537, %v1538
    %v1541 = vrot.slane %v86, 3
    %v1543 = vadd.f32 %v1540, %v1541
    %1546 = vrot.lane.b32.xlu0 %v83, 127
    %v1547 = vpop.permute.xlu0 %1546
    %1548 = vrot.lane.b32.xlu0 %v84, 127
    %v1549 = vpop.permute.xlu0 %1548
    %v1553 = vsel %vm213, %v1543, 0
    %1555 = vmatprep.subr.mxu0 0.0
    %1556 = vmatpush1.msra.mxu0 %v1547
    %1557 = vmatprep.subr.mxu0 0.0
    %1558 = vmatpush1.msra.mxu0 %v1549
    %1559 = vmatprep.subr.mxu0 0.0
    %1560 = vmatpush1.msra.mxu0 0.0
    %1561 = vmatprep.subr.mxu0 0.0
    %1562 = vmatpush1.msra.mxu0 0.0
    %1563 = vmatprep.subr.mxu0 0.0
    %1564 = vmatpush1.msra.mxu0 0.0
    %1565 = vmatprep.subr.mxu0 0.0
    %1566 = vmatpush1.msra.mxu0 0.0
    %1567 = vmatprep.subr.mxu0 0.0
    %1568 = vmatpush1.msra.mxu0 0.0
    %1569 = vmatprep.subr.mxu0 0.0
    %1570 = vmatpush1.msra.mxu0 0.0
    %1571 = vmatprep.subr.mxu0 0.0
    %1572 = vmatpush1.msra.mxu0 0.0
    %1573 = vmatprep.subr.mxu0 0.0
    %1574 = vmatpush1.msra.mxu0 0.0
    %1575 = vmatprep.subr.mxu0 0.0
    %1576 = vmatpush1.msra.mxu0 0.0
    %1577 = vmatprep.subr.mxu0 0.0
    %1578 = vmatpush1.msra.mxu0 0.0
    %1579 = vmatprep.subr.mxu0 0.0
    %1580 = vmatpush1.msra.mxu0 0.0
    %1581 = vmatprep.subr.mxu0 0.0
    %1582 = vmatpush1.msra.mxu0 0.0
    %1583 = vmatprep.subr.mxu0 0.0
    %1584 = vmatpush1.msra.mxu0 0.0
    %1585 = vmatprep.subr.mxu0 0.0
    %1586 = vmatpush1.msra.mxu0 0.0
    %1587 = vmatprep.subr.mxu0 0.0
    %1588 = vmatpush1.msra.mxu0 0.0
    %1589 = vmatprep.subr.mxu0 0.0
    %1590 = vmatpush1.msra.mxu0 0.0
    %1591 = vmatprep.subr.mxu0 0.0
    %1592 = vmatpush1.msra.mxu0 0.0
    %1593 = vmatprep.subr.mxu0 0.0
    %1594 = vmatpush1.msra.mxu0 0.0
    %1595 = vmatprep.subr.mxu0 0.0
    %1596 = vmatpush1.msra.mxu0 0.0
    %1597 = vmatprep.subr.mxu0 0.0
    %1598 = vmatpush1.msra.mxu0 0.0
    %1599 = vmatprep.subr.mxu0 0.0
    %1600 = vmatpush1.msra.mxu0 0.0
    %1601 = vmatprep.subr.mxu0 0.0
    %1602 = vmatpush1.msra.mxu0 0.0
    %1603 = vmatprep.subr.mxu0 0.0
    %1604 = vmatpush1.msra.mxu0 0.0
    %1605 = vmatprep.subr.mxu0 0.0
    %1606 = vmatpush1.msra.mxu0 0.0
    %1607 = vmatprep.subr.mxu0 0.0
    %1608 = vmatpush1.msra.mxu0 0.0
    %1609 = vmatprep.subr.mxu0 0.0
    %1610 = vmatpush1.msra.mxu0 0.0
    %1611 = vmatprep.subr.mxu0 0.0
    %1612 = vmatpush1.msra.mxu0 0.0
    %1613 = vmatprep.subr.mxu0 0.0
    %1614 = vmatpush1.msra.mxu0 0.0
    %1615 = vmatprep.subr.mxu0 0.0
    %1616 = vmatpush1.msra.mxu0 0.0
    %1617 = vmatprep.subr.mxu0 0.0
    %1618 = vmatpush1.msra.mxu0 0.0
    %1619 = vmatprep.mubr.f32.mxu0 0.0
    %1620 = vmatmul.mubr.f32.gmra.mrb[0].mxu0 %v1553
    %v1621 = vpop.f32.mrb[0].mxu0
    %v1622 = vadd.f32 0.0, %v1621
    %v1623 = vpop.f32.mrb[0].mxu0
    %1624 = vdwg.mxu0
    %1627 = vrot.lane.b32.xlu0 %v81, 127
    %v1628 = vpop.permute.xlu0 %1627
    %1629 = vrot.lane.b32.xlu0 %v82, 127
    %v1630 = vpop.permute.xlu0 %1629
    %v1634 = vsel %vm213, %v1524, 0
    %1636 = vmatprep.subr.mxu0 0.0
    %1637 = vmatpush1.msra.mxu0 %v1628
    %1638 = vmatprep.subr.mxu0 0.0
    %1639 = vmatpush1.msra.mxu0 %v1630
    %1640 = vmatprep.subr.mxu0 0.0
    %1641 = vmatpush1.msra.mxu0 0.0
    %1642 = vmatprep.subr.mxu0 0.0
    %1643 = vmatpush1.msra.mxu0 0.0
    %1644 = vmatprep.subr.mxu0 0.0
    %1645 = vmatpush1.msra.mxu0 0.0
    %1646 = vmatprep.subr.mxu0 0.0
    %1647 = vmatpush1.msra.mxu0 0.0
    %1648 = vmatprep.subr.mxu0 0.0
    %1649 = vmatpush1.msra.mxu0 0.0
    %1650 = vmatprep.subr.mxu0 0.0
    %1651 = vmatpush1.msra.mxu0 0.0
    %1652 = vmatprep.subr.mxu0 0.0
    %1653 = vmatpush1.msra.mxu0 0.0
    %1654 = vmatprep.subr.mxu0 0.0
    %1655 = vmatpush1.msra.mxu0 0.0
    %1656 = vmatprep.subr.mxu0 0.0
    %1657 = vmatpush1.msra.mxu0 0.0
    %1658 = vmatprep.subr.mxu0 0.0
    %1659 = vmatpush1.msra.mxu0 0.0
    %1660 = vmatprep.subr.mxu0 0.0
    %1661 = vmatpush1.msra.mxu0 0.0
    %1662 = vmatprep.subr.mxu0 0.0
    %1663 = vmatpush1.msra.mxu0 0.0
    %1664 = vmatprep.subr.mxu0 0.0
    %1665 = vmatpush1.msra.mxu0 0.0
    %1666 = vmatprep.subr.mxu0 0.0
    %1667 = vmatpush1.msra.mxu0 0.0
    %1668 = vmatprep.subr.mxu0 0.0
    %1669 = vmatpush1.msra.mxu0 0.0
    %1670 = vmatprep.subr.mxu0 0.0
    %1671 = vmatpush1.msra.mxu0 0.0
    %1672 = vmatprep.subr.mxu0 0.0
    %1673 = vmatpush1.msra.mxu0 0.0
    %1674 = vmatprep.subr.mxu0 0.0
    %1675 = vmatpush1.msra.mxu0 0.0
    %1676 = vmatprep.subr.mxu0 0.0
    %1677 = vmatpush1.msra.mxu0 0.0
    %1678 = vmatprep.subr.mxu0 0.0
    %1679 = vmatpush1.msra.mxu0 0.0
    %1680 = vmatprep.subr.mxu0 0.0
    %1681 = vmatpush1.msra.mxu0 0.0
    %1682 = vmatprep.subr.mxu0 0.0
    %1683 = vmatpush1.msra.mxu0 0.0
    %1684 = vmatprep.subr.mxu0 0.0
    %1685 = vmatpush1.msra.mxu0 0.0
    %1686 = vmatprep.subr.mxu0 0.0
    %1687 = vmatpush1.msra.mxu0 0.0
    %1688 = vmatprep.subr.mxu0 0.0
    %1689 = vmatpush1.msra.mxu0 0.0
    %1690 = vmatprep.subr.mxu0 0.0
    %1691 = vmatpush1.msra.mxu0 0.0
    %1692 = vmatprep.subr.mxu0 0.0
    %1693 = vmatpush1.msra.mxu0 0.0
    %1694 = vmatprep.subr.mxu0 0.0
    %1695 = vmatpush1.msra.mxu0 0.0
    %1696 = vmatprep.subr.mxu0 0.0
    %1697 = vmatpush1.msra.mxu0 0.0
    %1698 = vmatprep.subr.mxu0 0.0
    %1699 = vmatpush1.msra.mxu0 0.0
    %1700 = vmatprep.mubr.f32.mxu0 0.0
    %1701 = vmatmul.mubr.f32.gmra.mrb[0].mxu0 %v1634
    %v1702 = vpop.f32.mrb[0].mxu0
    %v1703 = vadd.f32 %v1622, %v1702
    %v1704 = vpop.f32.mrb[0].mxu0
    %1705 = vdwg.mxu0
    %v1706 = vrot.slane %v86, 5
    %v1708 = vadd.f32 %v1703, %v1706
    %v1709 = vxor.u32 %v1708, 2147483648
    %v1710 = vmul.f32 %v1709, 1.442695
    %v1711 = vpow.pop %v1710
    %v1712 = vadd.f32 %v1711, 1.0
    %v1713 = vrcp.pop %v1712
    %v1714 = vmul.f32 1.0, %v1713
    %vm1715 = vcmask 16384
    %1716 = vst.msk [vmem:[#allocation8] sm:$0x1] %vm1715, %v1714
    // Predicated region
    $region34: #{forward.1} parent=1 // pred_check
      _
    $region35: #{forward.1} parent=1 // pred_check_branch
      %1718 = sbr.rel (0) target = $region37
    $region36: #{forward.1} parent=1 // pred_region
      %s1720 = ssub.s32 16, 16
      %1721 = vsyncadd [#allocation4], %s1720
      %s1723 = sshll.u32 [#allocation8], 4
      %s1724 = int_to_ptr.vmem [resolvable:$true] %s1723
      %1726 = dma.vmem_to_hbm [thread:$0]  %s1724, 16, %s5, [#allocation4]
    $region37: #{forward.1} parent=1 // pred_fallthru
      _
    // Predicated region
    $region38: #{forward.1} parent=1 // pred_check
      _
    $region39: #{forward.1} parent=1 // pred_check_branch
      %1728 = sbr.rel (0) target = $region41
    $region40: #{forward.1} parent=1 // pred_region
      %1729 = dma.done [#allocation4], 16
    $region41: #{forward.1} parent=1 // pred_fallthru
      _
    %1730 = vsyncpa [#allocation3], 1
    %1731 = vsyncpa [#allocation6], 1
    %1732 = vsyncpa [#allocation4], 1

</llo_original>
